<compile_context>
chip_gen: v6e
topology: v6e:2x2x1
jax: 0.10.0
libtpu: 0.0.40
codegen_flags: <defaults>
</compile_context>

<pallas_src>
import functools

import jax
import jax.numpy as jnp
import numpy as np
from jax import lax
from jax.experimental import pallas as pl
from jax.experimental.pallas import tpu as pltpu


def _round_up(x, m):
    return -(-x // m) * m


def _transr_kernel(labels_ref, a_ref, p_ref, n_ref, w_ref, rel_ref, out_ref, *,
                   rel_dim, margin):
    """One batch tile.  Writes a lane-dense (8, TB) slab:
       row 0: ||transl - m_p||      (no eps, feeds `sim`)
       row 1: ||transl - m_n||
       row 2: relu(||.+eps|| - ||.+eps|| + margin)   (triplet hinge term)
       rows 3..7: zero padding."""
    tb = a_ref.shape[0]
    np_lanes = w_ref.shape[1]

    a = a_ref[...].astype(jnp.float32)
    xd_p = a - p_ref[...].astype(jnp.float32)        # a - p
    xd_n = a - n_ref[...].astype(jnp.float32)        # a - n

    # ONE packed MXU matmul for both diffs and ALL relations:
    #   (2*TB, D) @ (D, num_rel*R padded to 128 lanes) -> (2*TB, NP)
    lhs = jnp.concatenate([xd_p, xd_n], axis=0)
    y = jnp.dot(lhs, w_ref[...], preferred_element_type=jnp.float32)
    y = y + rel_ref[...]                              # packed rel row, added once

    # Per-row relation select: keep lanes [label*R, label*R + R).
    labels = labels_ref[...]                          # (TB, 1) int32
    lane = lax.broadcasted_iota(jnp.int32, (tb, np_lanes), 1)
    lo = labels * rel_dim
    sel = (lane >= lo) & (lane < lo + rel_dim)

    diff_p = jnp.where(sel, y[:tb], 0.0)              # transl - m_p
    diff_n = jnp.where(sel, y[tb:], 0.0)              # transl - m_n

    sum_sq_p = jnp.sum(diff_p * diff_p, axis=-1, keepdims=True)   # (TB, 1)
    sum_sq_n = jnp.sum(diff_n * diff_n, axis=-1, keepdims=True)
    sum_p = jnp.sum(diff_p, axis=-1, keepdims=True)
    sum_n = jnp.sum(diff_n, axis=-1, keepdims=True)

    # Norms used for `sim` (no eps, matches torch.norm).
    d_p = jnp.sqrt(sum_sq_p)
    d_n = jnp.sqrt(sum_sq_n)

    # TripletMarginLoss norms (pairwise_distance adds eps=1e-6 to the diff):
    # exact algebra, no second multiply+reduce pass.
    eps = jnp.float32(1e-6)
    eps_tail = jnp.float32(rel_dim) * eps * eps
    d_ap = jnp.sqrt(sum_sq_p + 2.0 * eps * sum_p + eps_tail)
    d_an = jnp.sqrt(sum_sq_n + 2.0 * eps * sum_n + eps_tail)
    hinge = jnp.maximum(d_ap - d_an + jnp.float32(margin), 0.0)

    # Lane-dense store: (TB, 8) column stack -> one XLU transpose -> (8, TB).
    packed = jnp.concatenate(
        [d_p, d_n, hinge, jnp.zeros((tb, 5), jnp.float32)], axis=1)
    out_ref[...] = packed.T


def transr_link_predictor_forward(a, p, n, labels, rel_emb, proj_matr, *,
                                  input_dim, rel_dim, margin=0.3):
    """Layout prep (parameter-sized only) + tiled Pallas kernel + scalar finish."""
    B = a.shape[0]
    num_relations = rel_emb.shape[0]
    itemsize = jnp.dtype(a.dtype).itemsize

    # Packed projection for ALL relations: (D, num_rel*R), zero-padded to a
    # 128-lane multiple.  Column k*R + r holds proj_matr[k] reshaped (R, D)[r, :].
    kr = num_relations * rel_dim
    np_lanes = _round_up(kr, 128)
    w_packed = proj_matr.astype(jnp.float32).reshape(
        num_relations, rel_dim, input_dim).transpose(2, 0, 1).reshape(input_dim, kr)
    w_packed = jnp.pad(w_packed, ((0, 0), (0, np_lanes - kr)))
    rel_packed = jnp.pad(rel_emb.astype(jnp.float32).reshape(1, kr),
                         ((0, 0), (0, np_lanes - kr)))

    labels2d = labels.astype(jnp.int32).reshape(B, 1)   # tiny (B*4 bytes)

    # --- batch tile: derive from VMEM budget minus resident parameter bytes.
    vmem_limit = 32 * 1024 * 1024
    resident = (input_dim + 1) * np_lanes * 4                   # packed W + rel
    row_bytes = 3 * input_dim * itemsize + 4 + 8 * 4            # a,p,n + label + out col
    stream_budget = max(vmem_limit - 4 * resident - (4 << 20), 1 << 20)
    tb = stream_budget // (2 * row_bytes)                       # x2: double buffering
    tb = max(128, min(4096, (tb // 128) * 128))
    tb = min(tb, _round_up(B, 128))                             # don't overshoot tiny batches
    if B > 256:
        # Guarantee >= 2 batch tiles so the "parallel" axis spans both v7x cores.
        tb = min(tb, _round_up(-(-B // 2), 128))
    nb = pl.cdiv(B, tb)

    kernel = functools.partial(_transr_kernel, rel_dim=rel_dim, margin=float(margin))

    flops = 2 * (2 * nb * tb) * input_dim * np_lanes            # one packed matmul/tile
    bytes_accessed = (3 * B * input_dim * itemsize + 4 * B
                      + 4 * (input_dim + 1) * np_lanes
                      + 4 * 8 * nb * tb)

    out = pl.pallas_call(
        kernel,
        out_shape=jax.ShapeDtypeStruct((8, nb * tb), jnp.float32),
        grid=(nb,),
        in_specs=[
            pl.BlockSpec((tb, 1), lambda i: (i, 0)),               # labels
            pl.BlockSpec((tb, input_dim), lambda i: (i, 0)),       # a
            pl.BlockSpec((tb, input_dim), lambda i: (i, 0)),       # p
            pl.BlockSpec((tb, input_dim), lambda i: (i, 0)),       # n
            pl.BlockSpec((input_dim, np_lanes), lambda i: (0, 0)), # packed W, resident
            pl.BlockSpec((1, np_lanes), lambda i: (0, 0)),         # packed rel, resident
        ],
        out_specs=pl.BlockSpec((8, tb), lambda i: (0, i)),         # lane-dense slab
        compiler_params=pltpu.CompilerParams(
            dimension_semantics=("parallel",),
            vmem_limit_bytes=vmem_limit,
        ),
        cost_estimate=pl.CostEstimate(
            flops=int(flops),
            transcendentals=int(4 * nb * tb),
            bytes_accessed=int(bytes_accessed)),
    )(labels2d, a, p, n, w_packed, rel_packed)

    d_p = out[0, :B]
    d_n = out[1, :B]
    hinge = out[2, :B]

    loss = jnp.mean(hinge)                           # reduction='mean'
    sim = jnp.concatenate([d_p, d_n], axis=0)        # (2B,)
    return loss, sim < margin


def _reference_forward(a, p, n, labels, rel_emb, proj_matr, *,
                       input_dim, rel_dim, margin=0.3):
    """Pure-JAX reference mirroring the PyTorch module exactly."""
    B = a.shape[0]
    weights = proj_matr[labels].reshape(B, rel_dim, input_dim)
    rels = rel_emb[labels]
    m_a = jnp.sum(weights * a[:, None, :], axis=-1)
    m_p = jnp.sum(weights * p[:, None, :], axis=-1)
    m_n = jnp.sum(weights * n[:, None, :], axis=-1)
    transl = m_a + rels
    sim = jnp.linalg.norm(
        jnp.concatenate([transl - m_p, transl - m_n], axis=0), axis=-1)
    eps = 1e-6
    d_ap = jnp.linalg.norm(transl - m_p + eps, axis=-1)
    d_an = jnp.linalg.norm(transl - m_n + eps, axis=-1)
    loss = jnp.mean(jnp.maximum(d_ap - d_an + margin, 0.0))
    return loss, sim < margin


if __name__ == "__main__":
    # Small shapes consistent with the module's forward.
    B = 8               # batch (number of triplets)
    INPUT_DIM = 32      # entity embedding dim
    REL_DIM = 16        # relation space dim
    NUM_RELATIONS = 5
    MARGIN = 0.3

    key = jax.random.PRNGKey(0)
    k1, k2, k3, k4, k5, k6 = jax.random.split(key, 6)

    # Deterministic "parameters" (nn.Embedding default init ~ N(0, 1)).
    rel_emb = jax.random.normal(k1, (NUM_RELATIONS, REL_DIM), dtype=jnp.float32)
    proj_matr = jax.random.normal(k2, (NUM_RELATIONS, INPUT_DIM * REL_DIM),
                                  dtype=jnp.float32)

    # Inputs.
    a = jax.random.normal(k3, (B, INPUT_DIM), dtype=jnp.float32)
    p = jax.random.normal(k4, (B, INPUT_DIM), dtype=jnp.float32)
    n = jax.random.normal(k5, (B, INPUT_DIM), dtype=jnp.float32)
    labels = jax.random.randint(k6, (B,), 0, NUM_RELATIONS, dtype=jnp.int32)

    loss, mask = transr_link_predictor_forward(
        a, p, n, labels, rel_emb, proj_matr,
        input_dim=INPUT_DIM, rel_dim=REL_DIM, margin=MARGIN)
    jax.block_until_ready((loss, mask))

    ref_loss, ref_mask = _reference_forward(
        a, p, n, labels, rel_emb, proj_matr,
        input_dim=INPUT_DIM, rel_dim=REL_DIM, margin=MARGIN)

    np.testing.assert_allclose(np.asarray(loss), np.asarray(ref_loss),
                               rtol=2e-3, atol=2e-3)
    np.testing.assert_array_equal(np.asarray(mask), np.asarray(ref_mask))

    print("KERNEL_OK")
</pallas_src>

<mosaic_0001>
module attributes {stable_mosaic.version = 11 : i64} {
  func.func @_transr_kernel(%arg0: i32, %arg1: memref<128x1xi32, #tpu.memory_space<vmem>>, %arg2: memref<128x32xf32, #tpu.memory_space<vmem>>, %arg3: memref<128x32xf32, #tpu.memory_space<vmem>>, %arg4: memref<128x32xf32, #tpu.memory_space<vmem>>, %arg5: memref<32x128xf32, #tpu.memory_space<vmem>>, %arg6: memref<1x128xf32, #tpu.memory_space<vmem>>, %arg7: memref<8x128xf32, #tpu.memory_space<vmem>>) attributes {dimension_semantics = [#tpu.dimension_semantics<parallel>], iteration_bounds = array<i64: 1>, scalar_prefetch = 0 : i64, scratch_operands = 0 : i64, tpu.core_type = #tpu.core_type<tc>, window_params = [{transform_indices = @transform_0, window_bounds = array<i64: 128, 1>}, {transform_indices = @transform_1, window_bounds = array<i64: 128, 32>}, {transform_indices = @transform_2, window_bounds = array<i64: 128, 32>}, {transform_indices = @transform_3, window_bounds = array<i64: 128, 32>}, {pipeline_mode = #tpu.pipeline_mode<synchronous>, transform_indices = @transform_4, window_bounds = array<i64: 32, 128>}, {pipeline_mode = #tpu.pipeline_mode<synchronous>, transform_indices = @transform_5, window_bounds = array<i64: 1, 128>}, {transform_indices = @transform_6, window_bounds = array<i64: 8, 128>}]} {
    %c0 = arith.constant 0 : index
    %c0_0 = arith.constant 0 : index
    %0 = vector.load %arg2[%c0, %c0_0] : memref<128x32xf32, #tpu.memory_space<vmem>>, vector<128x32xf32>
    %c0_1 = arith.constant 0 : index
    %c0_2 = arith.constant 0 : index
    %1 = vector.load %arg3[%c0_1, %c0_2] : memref<128x32xf32, #tpu.memory_space<vmem>>, vector<128x32xf32>
    %2 = arith.subf %0, %1 : vector<128x32xf32>
    %c0_3 = arith.constant 0 : index
    %c0_4 = arith.constant 0 : index
    %3 = vector.load %arg4[%c0_3, %c0_4] : memref<128x32xf32, #tpu.memory_space<vmem>>, vector<128x32xf32>
    %4 = arith.subf %0, %3 : vector<128x32xf32>
    %5 = tpu.concatenate %2, %4 in 0 : vector<128x32xf32>, vector<128x32xf32> -> vector<256x32xf32>
    %c0_5 = arith.constant 0 : index
    %c0_6 = arith.constant 0 : index
    %6 = vector.load %arg5[%c0_5, %c0_6] : memref<32x128xf32, #tpu.memory_space<vmem>>, vector<32x128xf32>
    %cst = arith.constant dense<0.000000e+00> : vector<256x128xf32>
    %7 = tpu.matmul %5, %6, %cst {dimension_numbers = #tpu.dot_dimension_numbers<[1], [0], [0], [1], [0, 0, 1, 1], [], []>} : vector<256x32xf32>, vector<32x128xf32>, vector<256x128xf32> -> vector<256x128xf32>
    %c0_7 = arith.constant 0 : index
    %c0_8 = arith.constant 0 : index
    %8 = vector.load %arg6[%c0_7, %c0_8] : memref<1x128xf32, #tpu.memory_space<vmem>>, vector<1x128xf32>
    %9 = vector.broadcast %8 : vector<1x128xf32> to vector<256x128xf32>
    %10 = arith.addf %7, %9 : vector<256x128xf32>
    %c0_9 = arith.constant 0 : index
    %c0_10 = arith.constant 0 : index
    %11 = vector.load %arg1[%c0_9, %c0_10] : memref<128x1xi32, #tpu.memory_space<vmem>>, vector<128x1xi32>
    %12 = tpu.iota {dimensions = array<i32: 1>} : vector<128x128xi32>
    %c16_i32 = arith.constant 16 : i32
    %13 = vector.broadcast %c16_i32 : i32 to vector<128x1xi32>
    %14 = arith.muli %11, %13 : vector<128x1xi32>
    %15 = vector.broadcast %14 : vector<128x1xi32> to vector<128x128xi32>
    %16 = arith.cmpi sge, %12, %15 : vector<128x128xi32>
    %c16_i32_11 = arith.constant 16 : i32
    %17 = vector.broadcast %c16_i32_11 : i32 to vector<128x1xi32>
    %18 = arith.addi %14, %17 : vector<128x1xi32>
    %19 = vector.broadcast %18 : vector<128x1xi32> to vector<128x128xi32>
    %20 = arith.cmpi slt, %12, %19 : vector<128x128xi32>
    %21 = arith.andi %16, %20 : vector<128x128xi1>
    %22 = vector.extract_strided_slice %10 {offsets = [0, 0], sizes = [128, 128], strides = [1, 1]} : vector<256x128xf32> to vector<128x128xf32>
    %cst_12 = arith.constant 0.000000e+00 : f32
    %23 = vector.broadcast %cst_12 : f32 to vector<128x128xf32>
    %24 = arith.select %21, %22, %23 : vector<128x128xi1>, vector<128x128xf32>
    %25 = vector.extract_strided_slice %10 {offsets = [128, 0], sizes = [128, 128], strides = [1, 1]} : vector<256x128xf32> to vector<128x128xf32>
    %cst_13 = arith.constant 0.000000e+00 : f32
    %26 = vector.broadcast %cst_13 : f32 to vector<128x128xf32>
    %27 = arith.select %21, %25, %26 : vector<128x128xi1>, vector<128x128xf32>
    %28 = arith.mulf %24, %24 : vector<128x128xf32>
    %cst_14 = arith.constant dense<0.000000e+00> : vector<128xf32>
    %29 = vector.multi_reduction <add>, %28, %cst_14 [1] : vector<128x128xf32> to vector<128xf32>
    %30 = vector.shape_cast %29 : vector<128xf32> to vector<128x1xf32>
    %31 = arith.mulf %27, %27 : vector<128x128xf32>
    %cst_15 = arith.constant dense<0.000000e+00> : vector<128xf32>
    %32 = vector.multi_reduction <add>, %31, %cst_15 [1] : vector<128x128xf32> to vector<128xf32>
    %33 = vector.shape_cast %32 : vector<128xf32> to vector<128x1xf32>
    %cst_16 = arith.constant dense<0.000000e+00> : vector<128xf32>
    %34 = vector.multi_reduction <add>, %24, %cst_16 [1] : vector<128x128xf32> to vector<128xf32>
    %35 = vector.shape_cast %34 : vector<128xf32> to vector<128x1xf32>
    %cst_17 = arith.constant dense<0.000000e+00> : vector<128xf32>
    %36 = vector.multi_reduction <add>, %27, %cst_17 [1] : vector<128x128xf32> to vector<128xf32>
    %37 = vector.shape_cast %36 : vector<128xf32> to vector<128x1xf32>
    %38 = math.sqrt %30 : vector<128x1xf32>
    %39 = math.sqrt %33 : vector<128x1xf32>
    %cst_18 = arith.constant 1.600000e+01 : f32
    %cst_19 = arith.constant 9.99999997E-7 : f32
    %40 = arith.mulf %cst_18, %cst_19 : f32
    %cst_20 = arith.constant 9.99999997E-7 : f32
    %41 = arith.mulf %40, %cst_20 : f32
    %cst_21 = arith.constant 2.000000e+00 : f32
    %cst_22 = arith.constant 9.99999997E-7 : f32
    %42 = arith.mulf %cst_21, %cst_22 : f32
    %43 = vector.broadcast %42 : f32 to vector<128x1xf32>
    %44 = arith.mulf %43, %35 : vector<128x1xf32>
    %45 = arith.addf %30, %44 : vector<128x1xf32>
    %46 = vector.broadcast %41 : f32 to vector<128x1xf32>
    %47 = arith.addf %45, %46 : vector<128x1xf32>
    %48 = math.sqrt %47 : vector<128x1xf32>
    %cst_23 = arith.constant 2.000000e+00 : f32
    %cst_24 = arith.constant 9.99999997E-7 : f32
    %49 = arith.mulf %cst_23, %cst_24 : f32
    %50 = vector.broadcast %49 : f32 to vector<128x1xf32>
    %51 = arith.mulf %50, %37 : vector<128x1xf32>
    %52 = arith.addf %33, %51 : vector<128x1xf32>
    %53 = vector.broadcast %41 : f32 to vector<128x1xf32>
    %54 = arith.addf %52, %53 : vector<128x1xf32>
    %55 = math.sqrt %54 : vector<128x1xf32>
    %56 = arith.subf %48, %55 : vector<128x1xf32>
    %cst_25 = arith.constant 3.000000e-01 : f32
    %57 = vector.broadcast %cst_25 : f32 to vector<128x1xf32>
    %58 = arith.addf %56, %57 : vector<128x1xf32>
    %cst_26 = arith.constant 0.000000e+00 : f32
    %59 = vector.broadcast %cst_26 : f32 to vector<128x1xf32>
    %60 = arith.maximumf %58, %59 : vector<128x1xf32>
    %cst_27 = arith.constant 0.000000e+00 : f32
    %61 = vector.broadcast %cst_27 : f32 to vector<128x5xf32>
    %62 = tpu.concatenate %38, %39, %60, %61 in 1 : vector<128x1xf32>, vector<128x1xf32>, vector<128x1xf32>, vector<128x5xf32> -> vector<128x8xf32>
    %63 = tpu.transpose %62, [1, 0] : vector<128x8xf32> -> vector<8x128xf32>
    %c0_28 = arith.constant 0 : index
    %c0_29 = arith.constant 0 : index
    %64 = vector.load %arg7[%c0_28, %c0_29] : memref<8x128xf32, #tpu.memory_space<vmem>>, vector<8x128xf32>
    tpu.vector_store %arg7[%c0_28, %c0_29], %63 {strides = array<i32>} : memref<8x128xf32, #tpu.memory_space<vmem>>, vector<8x128xf32>,
    return
  }
  func.func @transform_0(%arg0: i32) -> (i32, i32) {
    %c0_i32 = arith.constant 0 : i32
    %c0_i32_0 = arith.constant 0 : i32
    return %arg0, %c0_i32 : i32, i32
  }
  func.func @transform_1(%arg0: i32) -> (i32, i32) {
    %c0_i32 = arith.constant 0 : i32
    %c0_i32_0 = arith.constant 0 : i32
    return %arg0, %c0_i32 : i32, i32
  }
  func.func @transform_2(%arg0: i32) -> (i32, i32) {
    %c0_i32 = arith.constant 0 : i32
    %c0_i32_0 = arith.constant 0 : i32
    return %arg0, %c0_i32 : i32, i32
  }
  func.func @transform_3(%arg0: i32) -> (i32, i32) {
    %c0_i32 = arith.constant 0 : i32
    %c0_i32_0 = arith.constant 0 : i32
    return %arg0, %c0_i32 : i32, i32
  }
  func.func @transform_4(%arg0: i32) -> (i32, i32) {
    %c0_i32 = arith.constant 0 : i32
    %c0_i32_0 = arith.constant 0 : i32
    %c0_i32_1 = arith.constant 0 : i32
    return %c0_i32, %c0_i32_0 : i32, i32
  }
  func.func @transform_5(%arg0: i32) -> (i32, i32) {
    %c0_i32 = arith.constant 0 : i32
    %c0_i32_0 = arith.constant 0 : i32
    %c0_i32_1 = arith.constant 0 : i32
    return %c0_i32, %c0_i32_0 : i32, i32
  }
  func.func @transform_6(%arg0: i32) -> (i32, i32) {
    %c0_i32 = arith.constant 0 : i32
    %c0_i32_0 = arith.constant 0 : i32
    return %c0_i32, %arg0 : i32, i32
  }
}

</mosaic_0001>

<llo_original>
// kernel: tpu_custom_call.1
$region0: #{tpu_custom_call.1}
  #allocation0 [shape = 'u32[]', space=smem, size = 0x4, offset = 0x4, fixed_abs, tag = 'smem constant byte address 0x4 - core index']
  #allocation1 [shape = 'u32[144,128]{1,0:T(1,128)}', space=vmem, size = 0x12000, scoped, tag = 'internal scratch']
  %s0 = inlined_call_operand.vmem [shape: s32[8,1], index: 0, kind: input, shape index: {}]
  %s1 = inlined_call_operand.vmem [shape: f32[8,32], index: 1, kind: input, shape index: {}]
  %s2 = inlined_call_operand.hbm [shape: f32[8,32], index: 2, kind: input, shape index: {}]
  %s3 = inlined_call_operand.hbm [shape: f32[8,32], index: 3, kind: input, shape index: {}]
  %s4 = inlined_call_operand.hbm [shape: f32[32,128], index: 4, kind: input, shape index: {}]
  %s5 = inlined_call_operand.vmem [shape: f32[1,128], index: 5, kind: input, shape index: {}]
  %s6 = inlined_call_operand.hbm [shape: f32[8,128], index: 6, kind: output, shape index: {}]
  %s7 = sld [smem:[#allocation0]]
  $region46: #{tpu_custom_call.1} parent=0
    _
  %s9 = ssub.s32 1, %s7
  %s10 = scalar_select 0, %s9, %s7
  $region1: #{tpu_custom_call.1} parent=0
    #allocation2 [shape = 'u8[65536]{0}', space=vmem, size = 0x10000, scoped, tag = 'input window, operand 2, single buffered']
    #allocation3 [shape = 's32[1]{0}', space=sflag, size = 0x4, scoped, tag = 'scoped memory for tpu_custom_call.1']
    #allocation4 [shape = 's32[1]{0}', space=sflag, size = 0x4, scoped, tag = 'scoped memory for tpu_custom_call.1']
    #allocation5 [shape = 'u8[65536]{0}', space=vmem, size = 0x10000, scoped, tag = 'input window, operand 3, single buffered']
    #allocation6 [shape = 's32[1]{0}', space=sflag, size = 0x4, scoped, tag = 'scoped memory for tpu_custom_call.1']
    #allocation7 [shape = 'u8[16384]{0}', space=vmem, size = 0x4000, scoped, tag = 'input window, operand 4, single buffered']
    #allocation8 [shape = 'u8[4096]{0}', space=vmem, size = 0x1000, scoped, tag = 'output window, operand 0, single buffered']
    %11 = vsyncpa [#allocation3], 0
    %12 = vsyncpa [#allocation6], 0
    %13 = vsyncpa [#allocation4], 0
    // Predicated region
    $region2: #{tpu_custom_call.1} parent=1 // pred_check
      _
    $region3: #{tpu_custom_call.1} parent=1 // pred_check_branch
      %15 = sbr.rel (0) target = $region5
    $region4: #{tpu_custom_call.1} parent=1 // pred_region
      _
    $region5: #{tpu_custom_call.1} parent=1 // pred_fallthru
      _
    // Predicated region
    $region6: #{tpu_custom_call.1} parent=1 // pred_check
      _
    $region7: #{tpu_custom_call.1} parent=1 // pred_check_branch
      %17 = sbr.rel (0) target = $region9
    $region8: #{tpu_custom_call.1} parent=1 // pred_region
      _
    $region9: #{tpu_custom_call.1} parent=1 // pred_fallthru
      _
    // Predicated region
    $region10: #{tpu_custom_call.1} parent=1 // pred_check
      _
    $region11: #{tpu_custom_call.1} parent=1 // pred_check_branch
      %19 = sbr.rel (0) target = $region13
    $region12: #{tpu_custom_call.1} parent=1 // pred_region
      %s21 = ssub.s32 2048, 128
      %22 = vsyncadd [#allocation3], %s21
      %s23 = sshll.u32 [#allocation2], 4
      %s24 = int_to_ptr.vmem [resolvable:$true] %s23
      %29 = dma.hbm_to_vmem [thread:$0]  %s2, 128, %s24, [#allocation3], 128, 128, 8
    $region13: #{tpu_custom_call.1} parent=1 // pred_fallthru
      _
    // Predicated region
    $region14: #{tpu_custom_call.1} parent=1 // pred_check
      _
    $region15: #{tpu_custom_call.1} parent=1 // pred_check_branch
      %31 = sbr.rel (0) target = $region17
    $region16: #{tpu_custom_call.1} parent=1 // pred_region
      %s33 = ssub.s32 2048, 128
      %34 = vsyncadd [#allocation6], %s33
      %s35 = sshll.u32 [#allocation5], 4
      %s36 = int_to_ptr.vmem [resolvable:$true] %s35
      %41 = dma.hbm_to_vmem [thread:$0]  %s3, 128, %s36, [#allocation6], 128, 128, 8
    $region17: #{tpu_custom_call.1} parent=1 // pred_fallthru
      _
    // Predicated region
    $region18: #{tpu_custom_call.1} parent=1 // pred_check
      _
    $region19: #{tpu_custom_call.1} parent=1 // pred_check_branch
      %43 = sbr.rel (0) target = $region21
    $region20: #{tpu_custom_call.1} parent=1 // pred_region
      %s45 = ssub.s32 512, 512
      %46 = vsyncadd [#allocation6], %s45
      %s47 = sshll.u32 [#allocation7], 4
      %s48 = int_to_ptr.vmem [resolvable:$true] %s47
      %53 = dma.hbm_to_vmem [thread:$0]  %s4, 512, %s48, [#allocation6], 128, 128, 8
    $region21: #{tpu_custom_call.1} parent=1 // pred_fallthru
      _
    // Predicated region
    $region22: #{tpu_custom_call.1} parent=1 // pred_check
      _
    $region23: #{tpu_custom_call.1} parent=1 // pred_check_branch
      %55 = sbr.rel (0) target = $region25
    $region24: #{tpu_custom_call.1} parent=1 // pred_region
      _
    $region25: #{tpu_custom_call.1} parent=1 // pred_fallthru
      _
    // Predicated region
    $region26: #{tpu_custom_call.1} parent=1 // pred_check
      _
    $region27: #{tpu_custom_call.1} parent=1 // pred_check_branch
      %57 = sbr.rel (0) target = $region29
    $region28: #{tpu_custom_call.1} parent=1 // pred_region
      %58 = dma.done [#allocation3], 2048
    $region29: #{tpu_custom_call.1} parent=1 // pred_fallthru
      _
    // Predicated region
    $region30: #{tpu_custom_call.1} parent=1 // pred_check
      _
    $region31: #{tpu_custom_call.1} parent=1 // pred_check_branch
      %60 = sbr.rel (0) target = $region33
    $region32: #{tpu_custom_call.1} parent=1 // pred_region
      %61 = dma.done [#allocation6], 2048
    $region33: #{tpu_custom_call.1} parent=1 // pred_fallthru
      _
    // Predicated region
    $region34: #{tpu_custom_call.1} parent=1 // pred_check
      _
    $region35: #{tpu_custom_call.1} parent=1 // pred_check_branch
      %63 = sbr.rel (0) target = $region37
    $region36: #{tpu_custom_call.1} parent=1 // pred_region
      %64 = dma.done [#allocation6], 512
    $region37: #{tpu_custom_call.1} parent=1 // pred_fallthru
      _
    %v65 = vld [vmem:[%s1] sm:$0xff]
    %v66 = vld [vmem:[%s1 + $0x8] sm:$0xff]
    %v67 = vld [vmem:[%s1 + $0x10] sm:$0xff]
    %v68 = vld [vmem:[%s1 + $0x18] sm:$0xff]
    %v69 = vld [vmem:[%s1 + $0x20] sm:$0xff]
    %v70 = vld [vmem:[%s1 + $0x28] sm:$0xff]
    %v71 = vld [vmem:[%s1 + $0x30] sm:$0xff]
    %v72 = vld [vmem:[%s1 + $0x38] sm:$0xff]
    %v73 = vld [vmem:[%s1 + $0x40] sm:$0xff]
    %v74 = vld [vmem:[%s1 + $0x48] sm:$0xff]
    %v75 = vld [vmem:[%s1 + $0x50] sm:$0xff]
    %v76 = vld [vmem:[%s1 + $0x58] sm:$0xff]
    %v77 = vld [vmem:[%s1 + $0x60] sm:$0xff]
    %v78 = vld [vmem:[%s1 + $0x68] sm:$0xff]
    %v79 = vld [vmem:[%s1 + $0x70] sm:$0xff]
    %v80 = vld [vmem:[%s1 + $0x78] sm:$0xff]
    %v81 = vld [vmem:[#allocation2] sm:$0xff]
    %v82 = vld [vmem:[#allocation2 + $0x8] sm:$0xff]
    %v83 = vld [vmem:[#allocation2 + $0x10] sm:$0xff]
    %v84 = vld [vmem:[#allocation2 + $0x18] sm:$0xff]
    %v85 = vld [vmem:[#allocation2 + $0x20] sm:$0xff]
    %v86 = vld [vmem:[#allocation2 + $0x28] sm:$0xff]
    %v87 = vld [vmem:[#allocation2 + $0x30] sm:$0xff]
    %v88 = vld [vmem:[#allocation2 + $0x38] sm:$0xff]
    %v89 = vld [vmem:[#allocation2 + $0x40] sm:$0xff]
    %v90 = vld [vmem:[#allocation2 + $0x48] sm:$0xff]
    %v91 = vld [vmem:[#allocation2 + $0x50] sm:$0xff]
    %v92 = vld [vmem:[#allocation2 + $0x58] sm:$0xff]
    %v93 = vld [vmem:[#allocation2 + $0x60] sm:$0xff]
    %v94 = vld [vmem:[#allocation2 + $0x68] sm:$0xff]
    %v95 = vld [vmem:[#allocation2 + $0x70] sm:$0xff]
    %v96 = vld [vmem:[#allocation2 + $0x78] sm:$0xff]
    %v97 = vsub.f32 %v65, %v81
    %v98 = vsub.f32 %v66, %v82
    %v99 = vsub.f32 %v67, %v83
    %v100 = vsub.f32 %v68, %v84
    %v101 = vsub.f32 %v69, %v85
    %v102 = vsub.f32 %v70, %v86
    %v103 = vsub.f32 %v71, %v87
    %v104 = vsub.f32 %v72, %v88
    %v105 = vsub.f32 %v73, %v89
    %v106 = vsub.f32 %v74, %v90
    %v107 = vsub.f32 %v75, %v91
    %v108 = vsub.f32 %v76, %v92
    %v109 = vsub.f32 %v77, %v93
    %v110 = vsub.f32 %v78, %v94
    %v111 = vsub.f32 %v79, %v95
    %v112 = vsub.f32 %v80, %v96
    %v113 = vld [vmem:[#allocation5] sm:$0xff]
    %v114 = vld [vmem:[#allocation5 + $0x8] sm:$0xff]
    %v115 = vld [vmem:[#allocation5 + $0x10] sm:$0xff]
    %v116 = vld [vmem:[#allocation5 + $0x18] sm:$0xff]
    %v117 = vld [vmem:[#allocation5 + $0x20] sm:$0xff]
    %v118 = vld [vmem:[#allocation5 + $0x28] sm:$0xff]
    %v119 = vld [vmem:[#allocation5 + $0x30] sm:$0xff]
    %v120 = vld [vmem:[#allocation5 + $0x38] sm:$0xff]
    %v121 = vld [vmem:[#allocation5 + $0x40] sm:$0xff]
    %v122 = vld [vmem:[#allocation5 + $0x48] sm:$0xff]
    %v123 = vld [vmem:[#allocation5 + $0x50] sm:$0xff]
    %v124 = vld [vmem:[#allocation5 + $0x58] sm:$0xff]
    %v125 = vld [vmem:[#allocation5 + $0x60] sm:$0xff]
    %v126 = vld [vmem:[#allocation5 + $0x68] sm:$0xff]
    %v127 = vld [vmem:[#allocation5 + $0x70] sm:$0xff]
    %v128 = vld [vmem:[#allocation5 + $0x78] sm:$0xff]
    %v129 = vsub.f32 %v65, %v113
    %v130 = vsub.f32 %v66, %v114
    %v131 = vsub.f32 %v67, %v115
    %v132 = vsub.f32 %v68, %v116
    %v133 = vsub.f32 %v69, %v117
    %v134 = vsub.f32 %v70, %v118
    %v135 = vsub.f32 %v71, %v119
    %v136 = vsub.f32 %v72, %v120
    %v137 = vsub.f32 %v73, %v121
    %v138 = vsub.f32 %v74, %v122
    %v139 = vsub.f32 %v75, %v123
    %v140 = vsub.f32 %v76, %v124
    %v141 = vsub.f32 %v77, %v125
    %v142 = vsub.f32 %v78, %v126
    %v143 = vsub.f32 %v79, %v127
    %v144 = vsub.f32 %v80, %v128
    %v145 = vld [vmem:[#allocation7] sm:$0xff]
    %v146 = vld [vmem:[#allocation7 + $0x8] sm:$0xff]
    %v147 = vld [vmem:[#allocation7 + $0x10] sm:$0xff]
    %v148 = vld [vmem:[#allocation7 + $0x18] sm:$0xff]
    %v149 = vld [vmem:[%s5] sm:$0x1]
    %v151 = vlaneseq
    %v152 = vshrl.u32 %v151, 7
    %v153 = vsub.s32 0, %v152
    %v154 = vrot.slane %v149, %v153
    %vm156 = vcmask 261120
    %v158 = vsel %vm156, %v97, 0
    %v161 = vsel %vm156, %v98, 0
    %v164 = vsel %vm156, %v99, 0
    %v167 = vsel %vm156, %v100, 0
    %v170 = vsel %vm156, %v101, 0
    %v173 = vsel %vm156, %v102, 0
    %v176 = vsel %vm156, %v103, 0
    %v179 = vsel %vm156, %v104, 0
    %v182 = vsel %vm156, %v105, 0
    %v185 = vsel %vm156, %v106, 0
    %v188 = vsel %vm156, %v107, 0
    %v191 = vsel %vm156, %v108, 0
    %v194 = vsel %vm156, %v109, 0
    %v197 = vsel %vm156, %v110, 0
    %v200 = vsel %vm156, %v111, 0
    %v203 = vsel %vm156, %v112, 0
    %v206 = vsel %vm156, %v129, 0
    %v209 = vsel %vm156, %v130, 0
    %v212 = vsel %vm156, %v131, 0
    %v215 = vsel %vm156, %v132, 0
    %v218 = vsel %vm156, %v133, 0
    %v221 = vsel %vm156, %v134, 0
    %v224 = vsel %vm156, %v135, 0
    %v227 = vsel %vm156, %v136, 0
    %v230 = vsel %vm156, %v137, 0
    %v233 = vsel %vm156, %v138, 0
    %v236 = vsel %vm156, %v139, 0
    %v239 = vsel %vm156, %v140, 0
    %v242 = vsel %vm156, %v141, 0
    %v245 = vsel %vm156, %v142, 0
    %v248 = vsel %vm156, %v143, 0
    %v251 = vsel %vm156, %v144, 0
    %253 = vmatprep.subr.mxu0 0.0
    %254 = vmatpush1.msra.mxu0 0.0
    %255 = vmatprep.subr.mxu0 0.0
    %256 = vmatpush1.msra.mxu0 0.0
    %257 = vmatprep.subr.mxu0 0.0
    %258 = vmatpush1.msra.mxu0 0.0
    %259 = vmatprep.subr.mxu0 0.0
    %260 = vmatpush1.msra.mxu0 0.0
    %261 = vmatprep.subr.mxu0 0.0
    %262 = vmatpush1.msra.mxu0 0.0
    %263 = vmatprep.subr.mxu0 0.0
    %264 = vmatpush1.msra.mxu0 0.0
    %265 = vmatprep.subr.mxu0 0.0
    %266 = vmatpush1.msra.mxu0 0.0
    %267 = vmatprep.subr.mxu0 0.0
    %268 = vmatpush1.msra.mxu0 0.0
    %269 = vmatprep.subr.mxu0 0.0
    %270 = vmatpush1.msra.mxu0 0.0
    %271 = vmatprep.subr.mxu0 0.0
    %272 = vmatpush1.msra.mxu0 0.0
    %273 = vmatprep.subr.mxu0 0.0
    %274 = vmatpush1.msra.mxu0 0.0
    %275 = vmatprep.subr.mxu0 0.0
    %276 = vmatpush1.msra.mxu0 0.0
    %277 = vmatprep.subr.mxu0 0.0
    %278 = vmatpush1.msra.mxu0 %v148
    %279 = vmatprep.subr.mxu0 0.0
    %280 = vmatpush1.msra.mxu0 %v147
    %281 = vmatprep.subr.mxu0 0.0
    %282 = vmatpush1.msra.mxu0 %v146
    %283 = vmatprep.subr.mxu0 0.0
    %284 = vmatpush1.msra.mxu0 %v145
    %285 = vmatprep.subr.mxu0 0.0
    %286 = vmatpush2.msra.mxu0 0.0
    %287 = vmatprep.subr.mxu0 0.0
    %288 = vmatpush2.msra.mxu0 0.0
    %289 = vmatprep.subr.mxu0 0.0
    %290 = vmatpush2.msra.mxu0 0.0
    %291 = vmatprep.subr.mxu0 0.0
    %292 = vmatpush2.msra.mxu0 0.0
    %293 = vmatprep.subr.mxu0 0.0
    %294 = vmatpush2.msra.mxu0 0.0
    %295 = vmatprep.subr.mxu0 0.0
    %296 = vmatpush2.msra.mxu0 0.0
    %297 = vmatprep.subr.mxu0 0.0
    %298 = vmatpush2.msra.mxu0 0.0
    %299 = vmatprep.subr.mxu0 0.0
    %300 = vmatpush2.msra.mxu0 0.0
    %301 = vmatprep.subr.mxu0 0.0
    %302 = vmatpush2.msra.mxu0 0.0
    %303 = vmatprep.subr.mxu0 0.0
    %304 = vmatpush2.msra.mxu0 0.0
    %305 = vmatprep.subr.mxu0 0.0
    %306 = vmatpush2.msra.mxu0 0.0
    %307 = vmatprep.subr.mxu0 0.0
    %308 = vmatpush2.msra.mxu0 0.0
    %309 = vmatprep.subr.mxu0 0.0
    %310 = vmatpush2.msra.mxu0 0.0
    %311 = vmatprep.subr.mxu0 0.0
    %312 = vmatpush2.msra.mxu0 0.0
    %313 = vmatprep.subr.mxu0 0.0
    %314 = vmatpush2.msra.mxu0 0.0
    %315 = vmatprep.subr.mxu0 0.0
    %316 = vmatpush2.msra.mxu0 0.0
    %317 = vmatprep.mubr.f32.mxu0 0.0
    %318 = vmatmul.mubr.f32.gmra.mxu0 %v158
    %v319 = vpop.f32.mrf.mxu0
    %v320 = vadd.f32 %v154, %v319
    %v321 = vpop.f32.mrf.mxu0
    %322 = vmatprep.mubr.f32.mxu0 0.0
    %323 = vmatmul.mubr.f32.gmra.mxu0 %v161
    %v324 = vpop.f32.mrf.mxu0
    %v325 = vadd.f32 %v154, %v324
    %v326 = vpop.f32.mrf.mxu0
    %327 = vmatprep.mubr.f32.mxu0 0.0
    %328 = vmatmul.mubr.f32.gmra.mxu0 %v164
    %v329 = vpop.f32.mrf.mxu0
    %v330 = vadd.f32 %v154, %v329
    %v331 = vpop.f32.mrf.mxu0
    %332 = vmatprep.mubr.f32.mxu0 0.0
    %333 = vmatmul.mubr.f32.gmra.mxu0 %v167
    %v334 = vpop.f32.mrf.mxu0
    %v335 = vadd.f32 %v154, %v334
    %v336 = vpop.f32.mrf.mxu0
    %337 = vmatprep.mubr.f32.mxu0 0.0
    %338 = vmatmul.mubr.f32.gmra.mxu0 %v170
    %v339 = vpop.f32.mrf.mxu0
    %v340 = vadd.f32 %v154, %v339
    %v341 = vpop.f32.mrf.mxu0
    %342 = vmatprep.mubr.f32.mxu0 0.0
    %343 = vmatmul.mubr.f32.gmra.mxu0 %v173
    %v344 = vpop.f32.mrf.mxu0
    %v345 = vadd.f32 %v154, %v344
    %v346 = vpop.f32.mrf.mxu0
    %347 = vmatprep.mubr.f32.mxu0 0.0
    %348 = vmatmul.mubr.f32.gmra.mxu0 %v176
    %v349 = vpop.f32.mrf.mxu0
    %v350 = vadd.f32 %v154, %v349
    %v351 = vpop.f32.mrf.mxu0
    %352 = vmatprep.mubr.f32.mxu0 0.0
    %353 = vmatmul.mubr.f32.gmra.mxu0 %v179
    %v354 = vpop.f32.mrf.mxu0
    %v355 = vadd.f32 %v154, %v354
    %v356 = vpop.f32.mrf.mxu0
    %357 = vmatprep.mubr.f32.mxu0 0.0
    %358 = vmatmul.mubr.f32.gmra.mxu0 %v182
    %v359 = vpop.f32.mrf.mxu0
    %v360 = vadd.f32 %v154, %v359
    %v361 = vpop.f32.mrf.mxu0
    %362 = vmatprep.mubr.f32.mxu0 0.0
    %363 = vmatmul.mubr.f32.gmra.mxu0 %v185
    %v364 = vpop.f32.mrf.mxu0
    %v365 = vadd.f32 %v154, %v364
    %v366 = vpop.f32.mrf.mxu0
    %367 = vmatprep.mubr.f32.mxu0 0.0
    %368 = vmatmul.mubr.f32.gmra.mxu0 %v188
    %v369 = vpop.f32.mrf.mxu0
    %v370 = vadd.f32 %v154, %v369
    %v371 = vpop.f32.mrf.mxu0
    %372 = vmatprep.mubr.f32.mxu0 0.0
    %373 = vmatmul.mubr.f32.gmra.mxu0 %v191
    %v374 = vpop.f32.mrf.mxu0
    %v375 = vadd.f32 %v154, %v374
    %v376 = vpop.f32.mrf.mxu0
    %377 = vmatprep.mubr.f32.mxu0 0.0
    %378 = vmatmul.mubr.f32.gmra.mxu0 %v194
    %v379 = vpop.f32.mrf.mxu0
    %v380 = vadd.f32 %v154, %v379
    %v381 = vpop.f32.mrf.mxu0
    %382 = vmatprep.mubr.f32.mxu0 0.0
    %383 = vmatmul.mubr.f32.gmra.mxu0 %v197
    %v384 = vpop.f32.mrf.mxu0
    %v385 = vadd.f32 %v154, %v384
    %v386 = vpop.f32.mrf.mxu0
    %387 = vmatprep.mubr.f32.mxu0 0.0
    %388 = vmatmul.mubr.f32.gmra.mxu0 %v200
    %v389 = vpop.f32.mrf.mxu0
    %v390 = vadd.f32 %v154, %v389
    %v391 = vpop.f32.mrf.mxu0
    %392 = vmatprep.mubr.f32.mxu0 0.0
    %393 = vmatmul.mubr.f32.gmra.mxu0 %v203
    %v394 = vpop.f32.mrf.mxu0
    %v395 = vadd.f32 %v154, %v394
    %v396 = vpop.f32.mrf.mxu0
    %397 = vmatprep.mubr.f32.mxu0 0.0
    %398 = vmatmul.mubr.f32.gmra.mxu0 %v206
    %v399 = vpop.f32.mrf.mxu0
    %v400 = vadd.f32 %v154, %v399
    %v401 = vpop.f32.mrf.mxu0
    %402 = vmatprep.mubr.f32.mxu0 0.0
    %403 = vmatmul.mubr.f32.gmra.mxu0 %v209
    %v404 = vpop.f32.mrf.mxu0
    %v405 = vadd.f32 %v154, %v404
    %v406 = vpop.f32.mrf.mxu0
    %407 = vmatprep.mubr.f32.mxu0 0.0
    %408 = vmatmul.mubr.f32.gmra.mxu0 %v212
    %v409 = vpop.f32.mrf.mxu0
    %v410 = vadd.f32 %v154, %v409
    %v411 = vpop.f32.mrf.mxu0
    %412 = vmatprep.mubr.f32.mxu0 0.0
    %413 = vmatmul.mubr.f32.gmra.mxu0 %v215
    %v414 = vpop.f32.mrf.mxu0
    %v415 = vadd.f32 %v154, %v414
    %v416 = vpop.f32.mrf.mxu0
    %417 = vmatprep.mubr.f32.mxu0 0.0
    %418 = vmatmul.mubr.f32.gmra.mxu0 %v218
    %v419 = vpop.f32.mrf.mxu0
    %v420 = vadd.f32 %v154, %v419
    %v421 = vpop.f32.mrf.mxu0
    %422 = vmatprep.mubr.f32.mxu0 0.0
    %423 = vmatmul.mubr.f32.gmra.mxu0 %v221
    %v424 = vpop.f32.mrf.mxu0
    %v425 = vadd.f32 %v154, %v424
    %v426 = vpop.f32.mrf.mxu0
    %427 = vmatprep.mubr.f32.mxu0 0.0
    %428 = vmatmul.mubr.f32.gmra.mxu0 %v224
    %v429 = vpop.f32.mrf.mxu0
    %v430 = vadd.f32 %v154, %v429
    %v431 = vpop.f32.mrf.mxu0
    %432 = vmatprep.mubr.f32.mxu0 0.0
    %433 = vmatmul.mubr.f32.gmra.mxu0 %v227
    %v434 = vpop.f32.mrf.mxu0
    %v435 = vadd.f32 %v154, %v434
    %v436 = vpop.f32.mrf.mxu0
    %437 = vmatprep.mubr.f32.mxu0 0.0
    %438 = vmatmul.mubr.f32.gmra.mxu0 %v230
    %v439 = vpop.f32.mrf.mxu0
    %v440 = vadd.f32 %v154, %v439
    %v441 = vpop.f32.mrf.mxu0
    %442 = vmatprep.mubr.f32.mxu0 0.0
    %443 = vmatmul.mubr.f32.gmra.mxu0 %v233
    %v444 = vpop.f32.mrf.mxu0
    %v445 = vadd.f32 %v154, %v444
    %v446 = vpop.f32.mrf.mxu0
    %447 = vmatprep.mubr.f32.mxu0 0.0
    %448 = vmatmul.mubr.f32.gmra.mxu0 %v236
    %v449 = vpop.f32.mrf.mxu0
    %v450 = vadd.f32 %v154, %v449
    %v451 = vpop.f32.mrf.mxu0
    %452 = vmatprep.mubr.f32.mxu0 0.0
    %453 = vmatmul.mubr.f32.gmra.mxu0 %v239
    %v454 = vpop.f32.mrf.mxu0
    %v455 = vadd.f32 %v154, %v454
    %v456 = vpop.f32.mrf.mxu0
    %457 = vmatprep.mubr.f32.mxu0 0.0
    %458 = vmatmul.mubr.f32.gmra.mxu0 %v242
    %v459 = vpop.f32.mrf.mxu0
    %v460 = vadd.f32 %v154, %v459
    %v461 = vpop.f32.mrf.mxu0
    %462 = vmatprep.mubr.f32.mxu0 0.0
    %463 = vmatmul.mubr.f32.gmra.mxu0 %v245
    %v464 = vpop.f32.mrf.mxu0
    %v465 = vadd.f32 %v154, %v464
    %v466 = vpop.f32.mrf.mxu0
    %467 = vmatprep.mubr.f32.mxu0 0.0
    %468 = vmatmul.mubr.f32.gmra.mxu0 %v248
    %v469 = vpop.f32.mrf.mxu0
    %v470 = vadd.f32 %v154, %v469
    %v471 = vpop.f32.mrf.mxu0
    %472 = vmatprep.mubr.f32.mxu0 0.0
    %473 = vmatmul.mubr.f32.gmra.mxu0 %v251
    %v474 = vpop.f32.mrf.mxu0
    %v475 = vadd.f32 %v154, %v474
    %v476 = vpop.f32.mrf.mxu0
    %477 = vdwg.mxu0
    %v478 = vld [vmem:[%s0] sm:$0xff]
    %v479 = vld [vmem:[%s0 + $0x8] sm:$0xff]
    %v480 = vld [vmem:[%s0 + $0x10] sm:$0xff]
    %v481 = vld [vmem:[%s0 + $0x18] sm:$0xff]
    %v482 = vld [vmem:[%s0 + $0x20] sm:$0xff]
    %v483 = vld [vmem:[%s0 + $0x28] sm:$0xff]
    %v484 = vld [vmem:[%s0 + $0x30] sm:$0xff]
    %v485 = vld [vmem:[%s0 + $0x38] sm:$0xff]
    %v486 = vld [vmem:[%s0 + $0x40] sm:$0xff]
    %v487 = vld [vmem:[%s0 + $0x48] sm:$0xff]
    %v488 = vld [vmem:[%s0 + $0x50] sm:$0xff]
    %v489 = vld [vmem:[%s0 + $0x58] sm:$0xff]
    %v490 = vld [vmem:[%s0 + $0x60] sm:$0xff]
    %v491 = vld [vmem:[%s0 + $0x68] sm:$0xff]
    %v492 = vld [vmem:[%s0 + $0x70] sm:$0xff]
    %v493 = vld [vmem:[%s0 + $0x78] sm:$0xff]
    %v494 = vlaneseq
    %v495 = vand.u32 %v494, 127
    %v496 = vmul.u32 %v478, 16
    %v497 = vmul.u32 %v479, 16
    %v498 = vmul.u32 %v480, 16
    %v499 = vmul.u32 %v481, 16
    %v500 = vmul.u32 %v482, 16
    %v501 = vmul.u32 %v483, 16
    %v502 = vmul.u32 %v484, 16
    %v503 = vmul.u32 %v485, 16
    %v504 = vmul.u32 %v486, 16
    %v505 = vmul.u32 %v487, 16
    %v506 = vmul.u32 %v488, 16
    %v507 = vmul.u32 %v489, 16
    %v508 = vmul.u32 %v490, 16
    %v509 = vmul.u32 %v491, 16
    %v510 = vmul.u32 %v492, 16
    %v511 = vmul.u32 %v493, 16
    %512 = vset.pattern.permute.xlu0 0
    %513 = vperm.xlu0 %512, %v496
    %v514 = vpop.permute.xlu0 %513
    %515 = vset.pattern.permute.xlu0 0
    %516 = vperm.xlu0 %515, %v497
    %v517 = vpop.permute.xlu0 %516
    %518 = vset.pattern.permute.xlu0 0
    %519 = vperm.xlu0 %518, %v498
    %v520 = vpop.permute.xlu0 %519
    %521 = vset.pattern.permute.xlu0 0
    %522 = vperm.xlu0 %521, %v499
    %v523 = vpop.permute.xlu0 %522
    %524 = vset.pattern.permute.xlu0 0
    %525 = vperm.xlu0 %524, %v500
    %v526 = vpop.permute.xlu0 %525
    %527 = vset.pattern.permute.xlu0 0
    %528 = vperm.xlu0 %527, %v501
    %v529 = vpop.permute.xlu0 %528
    %530 = vset.pattern.permute.xlu0 0
    %531 = vperm.xlu0 %530, %v502
    %v532 = vpop.permute.xlu0 %531
    %533 = vset.pattern.permute.xlu0 0
    %534 = vperm.xlu0 %533, %v503
    %v535 = vpop.permute.xlu0 %534
    %536 = vset.pattern.permute.xlu0 0
    %537 = vperm.xlu0 %536, %v504
    %v538 = vpop.permute.xlu0 %537
    %539 = vset.pattern.permute.xlu0 0
    %540 = vperm.xlu0 %539, %v505
    %v541 = vpop.permute.xlu0 %540
    %542 = vset.pattern.permute.xlu0 0
    %543 = vperm.xlu0 %542, %v506
    %v544 = vpop.permute.xlu0 %543
    %545 = vset.pattern.permute.xlu0 0
    %546 = vperm.xlu0 %545, %v507
    %v547 = vpop.permute.xlu0 %546
    %548 = vset.pattern.permute.xlu0 0
    %549 = vperm.xlu0 %548, %v508
    %v550 = vpop.permute.xlu0 %549
    %551 = vset.pattern.permute.xlu0 0
    %552 = vperm.xlu0 %551, %v509
    %v553 = vpop.permute.xlu0 %552
    %554 = vset.pattern.permute.xlu0 0
    %555 = vperm.xlu0 %554, %v510
    %v556 = vpop.permute.xlu0 %555
    %557 = vset.pattern.permute.xlu0 0
    %558 = vperm.xlu0 %557, %v511
    %v559 = vpop.permute.xlu0 %558
    %vm560 = vcmp.ge.s32.totalorder %v495, %v514
    %vm561 = vcmp.ge.s32.totalorder %v495, %v517
    %vm562 = vcmp.ge.s32.totalorder %v495, %v520
    %vm563 = vcmp.ge.s32.totalorder %v495, %v523
    %vm564 = vcmp.ge.s32.totalorder %v495, %v526
    %vm565 = vcmp.ge.s32.totalorder %v495, %v529
    %vm566 = vcmp.ge.s32.totalorder %v495, %v532
    %vm567 = vcmp.ge.s32.totalorder %v495, %v535
    %vm568 = vcmp.ge.s32.totalorder %v495, %v538
    %vm569 = vcmp.ge.s32.totalorder %v495, %v541
    %vm570 = vcmp.ge.s32.totalorder %v495, %v544
    %vm571 = vcmp.ge.s32.totalorder %v495, %v547
    %vm572 = vcmp.ge.s32.totalorder %v495, %v550
    %vm573 = vcmp.ge.s32.totalorder %v495, %v553
    %vm574 = vcmp.ge.s32.totalorder %v495, %v556
    %vm575 = vcmp.ge.s32.totalorder %v495, %v559
    %v576 = vadd.s32 %v496, 16
    %v577 = vadd.s32 %v497, 16
    %v578 = vadd.s32 %v498, 16
    %v579 = vadd.s32 %v499, 16
    %v580 = vadd.s32 %v500, 16
    %v581 = vadd.s32 %v501, 16
    %v582 = vadd.s32 %v502, 16
    %v583 = vadd.s32 %v503, 16
    %v584 = vadd.s32 %v504, 16
    %v585 = vadd.s32 %v505, 16
    %v586 = vadd.s32 %v506, 16
    %v587 = vadd.s32 %v507, 16
    %v588 = vadd.s32 %v508, 16
    %v589 = vadd.s32 %v509, 16
    %v590 = vadd.s32 %v510, 16
    %v591 = vadd.s32 %v511, 16
    %592 = vset.pattern.permute.xlu0 0
    %593 = vperm.xlu0 %592, %v576
    %v594 = vpop.permute.xlu0 %593
    %595 = vset.pattern.permute.xlu0 0
    %596 = vperm.xlu0 %595, %v577
    %v597 = vpop.permute.xlu0 %596
    %598 = vset.pattern.permute.xlu0 0
    %599 = vperm.xlu0 %598, %v578
    %v600 = vpop.permute.xlu0 %599
    %601 = vset.pattern.permute.xlu0 0
    %602 = vperm.xlu0 %601, %v579
    %v603 = vpop.permute.xlu0 %602
    %604 = vset.pattern.permute.xlu0 0
    %605 = vperm.xlu0 %604, %v580
    %v606 = vpop.permute.xlu0 %605
    %607 = vset.pattern.permute.xlu0 0
    %608 = vperm.xlu0 %607, %v581
    %v609 = vpop.permute.xlu0 %608
    %610 = vset.pattern.permute.xlu0 0
    %611 = vperm.xlu0 %610, %v582
    %v612 = vpop.permute.xlu0 %611
    %613 = vset.pattern.permute.xlu0 0
    %614 = vperm.xlu0 %613, %v583
    %v615 = vpop.permute.xlu0 %614
    %616 = vset.pattern.permute.xlu0 0
    %617 = vperm.xlu0 %616, %v584
    %v618 = vpop.permute.xlu0 %617
    %619 = vset.pattern.permute.xlu0 0
    %620 = vperm.xlu0 %619, %v585
    %v621 = vpop.permute.xlu0 %620
    %622 = vset.pattern.permute.xlu0 0
    %623 = vperm.xlu0 %622, %v586
    %v624 = vpop.permute.xlu0 %623
    %625 = vset.pattern.permute.xlu0 0
    %626 = vperm.xlu0 %625, %v587
    %v627 = vpop.permute.xlu0 %626
    %628 = vset.pattern.permute.xlu0 0
    %629 = vperm.xlu0 %628, %v588
    %v630 = vpop.permute.xlu0 %629
    %631 = vset.pattern.permute.xlu0 0
    %632 = vperm.xlu0 %631, %v589
    %v633 = vpop.permute.xlu0 %632
    %634 = vset.pattern.permute.xlu0 0
    %635 = vperm.xlu0 %634, %v590
    %v636 = vpop.permute.xlu0 %635
    %637 = vset.pattern.permute.xlu0 0
    %638 = vperm.xlu0 %637, %v591
    %v639 = vpop.permute.xlu0 %638
    %vm640 = vcmp.lt.s32.totalorder %v495, %v594
    %vm641 = vcmp.lt.s32.totalorder %v495, %v597
    %vm642 = vcmp.lt.s32.totalorder %v495, %v600
    %vm643 = vcmp.lt.s32.totalorder %v495, %v603
    %vm644 = vcmp.lt.s32.totalorder %v495, %v606
    %vm645 = vcmp.lt.s32.totalorder %v495, %v609
    %vm646 = vcmp.lt.s32.totalorder %v495, %v612
    %vm647 = vcmp.lt.s32.totalorder %v495, %v615
    %vm648 = vcmp.lt.s32.totalorder %v495, %v618
    %vm649 = vcmp.lt.s32.totalorder %v495, %v621
    %vm650 = vcmp.lt.s32.totalorder %v495, %v624
    %vm651 = vcmp.lt.s32.totalorder %v495, %v627
    %vm652 = vcmp.lt.s32.totalorder %v495, %v630
    %vm653 = vcmp.lt.s32.totalorder %v495, %v633
    %vm654 = vcmp.lt.s32.totalorder %v495, %v636
    %vm655 = vcmp.lt.s32.totalorder %v495, %v639
    %vm656 = vmand %vm560, %vm640
    %vm657 = vmand %vm561, %vm641
    %vm658 = vmand %vm562, %vm642
    %vm659 = vmand %vm563, %vm643
    %vm660 = vmand %vm564, %vm644
    %vm661 = vmand %vm565, %vm645
    %vm662 = vmand %vm566, %vm646
    %vm663 = vmand %vm567, %vm647
    %vm664 = vmand %vm568, %vm648
    %vm665 = vmand %vm569, %vm649
    %vm666 = vmand %vm570, %vm650
    %vm667 = vmand %vm571, %vm651
    %vm668 = vmand %vm572, %vm652
    %vm669 = vmand %vm573, %vm653
    %vm670 = vmand %vm574, %vm654
    %vm671 = vmand %vm575, %vm655
    %v672 = vsel %vm656, %v320, 0.0
    %v673 = vsel %vm657, %v325, 0.0
    %v674 = vsel %vm658, %v330, 0.0
    %v675 = vsel %vm659, %v335, 0.0
    %v676 = vsel %vm660, %v340, 0.0
    %v677 = vsel %vm661, %v345, 0.0
    %v678 = vsel %vm662, %v350, 0.0
    %v679 = vsel %vm663, %v355, 0.0
    %v680 = vsel %vm664, %v360, 0.0
    %v681 = vsel %vm665, %v365, 0.0
    %v682 = vsel %vm666, %v370, 0.0
    %v683 = vsel %vm667, %v375, 0.0
    %v684 = vsel %vm668, %v380, 0.0
    %v685 = vsel %vm669, %v385, 0.0
    %v686 = vsel %vm670, %v390, 0.0
    %v687 = vsel %vm671, %v395, 0.0
    %v688 = vsel %vm656, %v400, 0.0
    %v689 = vsel %vm657, %v405, 0.0
    %v690 = vsel %vm658, %v410, 0.0
    %v691 = vsel %vm659, %v415, 0.0
    %v692 = vsel %vm660, %v420, 0.0
    %v693 = vsel %vm661, %v425, 0.0
    %v694 = vsel %vm662, %v430, 0.0
    %v695 = vsel %vm663, %v435, 0.0
    %v696 = vsel %vm664, %v440, 0.0
    %v697 = vsel %vm665, %v445, 0.0
    %v698 = vsel %vm666, %v450, 0.0
    %v699 = vsel %vm667, %v455, 0.0
    %v700 = vsel %vm668, %v460, 0.0
    %v701 = vsel %vm669, %v465, 0.0
    %v702 = vsel %vm670, %v470, 0.0
    %v703 = vsel %vm671, %v475, 0.0
    %v704 = vmul.f32 %v672, %v672
    %v705 = vmul.f32 %v673, %v673
    %v706 = vmul.f32 %v674, %v674
    %v707 = vmul.f32 %v675, %v675
    %v708 = vmul.f32 %v676, %v676
    %v709 = vmul.f32 %v677, %v677
    %v710 = vmul.f32 %v678, %v678
    %v711 = vmul.f32 %v679, %v679
    %v712 = vmul.f32 %v680, %v680
    %v713 = vmul.f32 %v681, %v681
    %v714 = vmul.f32 %v682, %v682
    %v715 = vmul.f32 %v683, %v683
    %v716 = vmul.f32 %v684, %v684
    %v717 = vmul.f32 %v685, %v685
    %v718 = vmul.f32 %v686, %v686
    %v719 = vmul.f32 %v687, %v687
    %720 = vadd.xlane.f32.xlu0 %v704
    %v721 = vpop.xlane.xlu0 %720
    %722 = vadd.xlane.f32.xlu0 %v705
    %v723 = vpop.xlane.xlu0 %722
    %724 = vadd.xlane.f32.xlu0 %v706
    %v725 = vpop.xlane.xlu0 %724
    %726 = vadd.xlane.f32.xlu0 %v707
    %v727 = vpop.xlane.xlu0 %726
    %728 = vadd.xlane.f32.xlu0 %v708
    %v729 = vpop.xlane.xlu0 %728
    %730 = vadd.xlane.f32.xlu0 %v709
    %v731 = vpop.xlane.xlu0 %730
    %732 = vadd.xlane.f32.xlu0 %v710
    %v733 = vpop.xlane.xlu0 %732
    %734 = vadd.xlane.f32.xlu0 %v711
    %v735 = vpop.xlane.xlu0 %734
    %736 = vadd.xlane.f32.xlu0 %v712
    %v737 = vpop.xlane.xlu0 %736
    %738 = vadd.xlane.f32.xlu0 %v713
    %v739 = vpop.xlane.xlu0 %738
    %740 = vadd.xlane.f32.xlu0 %v714
    %v741 = vpop.xlane.xlu0 %740
    %742 = vadd.xlane.f32.xlu0 %v715
    %v743 = vpop.xlane.xlu0 %742
    %744 = vadd.xlane.f32.xlu0 %v716
    %v745 = vpop.xlane.xlu0 %744
    %746 = vadd.xlane.f32.xlu0 %v717
    %v747 = vpop.xlane.xlu0 %746
    %748 = vadd.xlane.f32.xlu0 %v718
    %v749 = vpop.xlane.xlu0 %748
    %750 = vadd.xlane.f32.xlu0 %v719
    %v751 = vpop.xlane.xlu0 %750
    %v752 = vmul.f32 %v688, %v688
    %v753 = vmul.f32 %v689, %v689
    %v754 = vmul.f32 %v690, %v690
    %v755 = vmul.f32 %v691, %v691
    %v756 = vmul.f32 %v692, %v692
    %v757 = vmul.f32 %v693, %v693
    %v758 = vmul.f32 %v694, %v694
    %v759 = vmul.f32 %v695, %v695
    %v760 = vmul.f32 %v696, %v696
    %v761 = vmul.f32 %v697, %v697
    %v762 = vmul.f32 %v698, %v698
    %v763 = vmul.f32 %v699, %v699
    %v764 = vmul.f32 %v700, %v700
    %v765 = vmul.f32 %v701, %v701
    %v766 = vmul.f32 %v702, %v702
    %v767 = vmul.f32 %v703, %v703
    %768 = vadd.xlane.f32.xlu0 %v752
    %v769 = vpop.xlane.xlu0 %768
    %770 = vadd.xlane.f32.xlu0 %v753
    %v771 = vpop.xlane.xlu0 %770
    %772 = vadd.xlane.f32.xlu0 %v754
    %v773 = vpop.xlane.xlu0 %772
    %774 = vadd.xlane.f32.xlu0 %v755
    %v775 = vpop.xlane.xlu0 %774
    %776 = vadd.xlane.f32.xlu0 %v756
    %v777 = vpop.xlane.xlu0 %776
    %778 = vadd.xlane.f32.xlu0 %v757
    %v779 = vpop.xlane.xlu0 %778
    %780 = vadd.xlane.f32.xlu0 %v758
    %v781 = vpop.xlane.xlu0 %780
    %782 = vadd.xlane.f32.xlu0 %v759
    %v783 = vpop.xlane.xlu0 %782
    %784 = vadd.xlane.f32.xlu0 %v760
    %v785 = vpop.xlane.xlu0 %784
    %786 = vadd.xlane.f32.xlu0 %v761
    %v787 = vpop.xlane.xlu0 %786
    %788 = vadd.xlane.f32.xlu0 %v762
    %v789 = vpop.xlane.xlu0 %788
    %790 = vadd.xlane.f32.xlu0 %v763
    %v791 = vpop.xlane.xlu0 %790
    %792 = vadd.xlane.f32.xlu0 %v764
    %v793 = vpop.xlane.xlu0 %792
    %794 = vadd.xlane.f32.xlu0 %v765
    %v795 = vpop.xlane.xlu0 %794
    %796 = vadd.xlane.f32.xlu0 %v766
    %v797 = vpop.xlane.xlu0 %796
    %798 = vadd.xlane.f32.xlu0 %v767
    %v799 = vpop.xlane.xlu0 %798
    %800 = vadd.xlane.f32.xlu0 %v672
    %v801 = vpop.xlane.xlu0 %800
    %802 = vadd.xlane.f32.xlu0 %v673
    %v803 = vpop.xlane.xlu0 %802
    %804 = vadd.xlane.f32.xlu0 %v674
    %v805 = vpop.xlane.xlu0 %804
    %806 = vadd.xlane.f32.xlu0 %v675
    %v807 = vpop.xlane.xlu0 %806
    %808 = vadd.xlane.f32.xlu0 %v676
    %v809 = vpop.xlane.xlu0 %808
    %810 = vadd.xlane.f32.xlu0 %v677
    %v811 = vpop.xlane.xlu0 %810
    %812 = vadd.xlane.f32.xlu0 %v678
    %v813 = vpop.xlane.xlu0 %812
    %814 = vadd.xlane.f32.xlu0 %v679
    %v815 = vpop.xlane.xlu0 %814
    %816 = vadd.xlane.f32.xlu0 %v680
    %v817 = vpop.xlane.xlu0 %816
    %818 = vadd.xlane.f32.xlu0 %v681
    %v819 = vpop.xlane.xlu0 %818
    %820 = vadd.xlane.f32.xlu0 %v682
    %v821 = vpop.xlane.xlu0 %820
    %822 = vadd.xlane.f32.xlu0 %v683
    %v823 = vpop.xlane.xlu0 %822
    %824 = vadd.xlane.f32.xlu0 %v684
    %v825 = vpop.xlane.xlu0 %824
    %826 = vadd.xlane.f32.xlu0 %v685
    %v827 = vpop.xlane.xlu0 %826
    %828 = vadd.xlane.f32.xlu0 %v686
    %v829 = vpop.xlane.xlu0 %828
    %830 = vadd.xlane.f32.xlu0 %v687
    %v831 = vpop.xlane.xlu0 %830
    %832 = vadd.xlane.f32.xlu0 %v688
    %v833 = vpop.xlane.xlu0 %832
    %834 = vadd.xlane.f32.xlu0 %v689
    %v835 = vpop.xlane.xlu0 %834
    %836 = vadd.xlane.f32.xlu0 %v690
    %v837 = vpop.xlane.xlu0 %836
    %838 = vadd.xlane.f32.xlu0 %v691
    %v839 = vpop.xlane.xlu0 %838
    %840 = vadd.xlane.f32.xlu0 %v692
    %v841 = vpop.xlane.xlu0 %840
    %842 = vadd.xlane.f32.xlu0 %v693
    %v843 = vpop.xlane.xlu0 %842
    %844 = vadd.xlane.f32.xlu0 %v694
    %v845 = vpop.xlane.xlu0 %844
    %846 = vadd.xlane.f32.xlu0 %v695
    %v847 = vpop.xlane.xlu0 %846
    %848 = vadd.xlane.f32.xlu0 %v696
    %v849 = vpop.xlane.xlu0 %848
    %850 = vadd.xlane.f32.xlu0 %v697
    %v851 = vpop.xlane.xlu0 %850
    %852 = vadd.xlane.f32.xlu0 %v698
    %v853 = vpop.xlane.xlu0 %852
    %854 = vadd.xlane.f32.xlu0 %v699
    %v855 = vpop.xlane.xlu0 %854
    %856 = vadd.xlane.f32.xlu0 %v700
    %v857 = vpop.xlane.xlu0 %856
    %858 = vadd.xlane.f32.xlu0 %v701
    %v859 = vpop.xlane.xlu0 %858
    %860 = vadd.xlane.f32.xlu0 %v702
    %v861 = vpop.xlane.xlu0 %860
    %862 = vadd.xlane.f32.xlu0 %v703
    %v863 = vpop.xlane.xlu0 %862
    %v864 = vrsqrt.pop %v721
    %v865 = vmul.f32 %v721, %v864
    %vm866 = vcmp.eq.f32.partialorder %v721, inf
    %v867 = vsel %vm866, %v721, %v865
    %vm868 = vcmp.eq.f32.partialorder %v721, 0.0
    %v869 = vand.u32 %v721, 2147483648
    %v870 = vsel %vm868, %v869, %v867
    %v871 = vrsqrt.pop %v723
    %v872 = vmul.f32 %v723, %v871
    %vm873 = vcmp.eq.f32.partialorder %v723, inf
    %v874 = vsel %vm873, %v723, %v872
    %vm875 = vcmp.eq.f32.partialorder %v723, 0.0
    %v876 = vand.u32 %v723, 2147483648
    %v877 = vsel %vm875, %v876, %v874
    %v878 = vrsqrt.pop %v725
    %v879 = vmul.f32 %v725, %v878
    %vm880 = vcmp.eq.f32.partialorder %v725, inf
    %v881 = vsel %vm880, %v725, %v879
    %vm882 = vcmp.eq.f32.partialorder %v725, 0.0
    %v883 = vand.u32 %v725, 2147483648
    %v884 = vsel %vm882, %v883, %v881
    %v885 = vrsqrt.pop %v727
    %v886 = vmul.f32 %v727, %v885
    %vm887 = vcmp.eq.f32.partialorder %v727, inf
    %v888 = vsel %vm887, %v727, %v886
    %vm889 = vcmp.eq.f32.partialorder %v727, 0.0
    %v890 = vand.u32 %v727, 2147483648
    %v891 = vsel %vm889, %v890, %v888
    %v892 = vrsqrt.pop %v729
    %v893 = vmul.f32 %v729, %v892
    %vm894 = vcmp.eq.f32.partialorder %v729, inf
    %v895 = vsel %vm894, %v729, %v893
    %vm896 = vcmp.eq.f32.partialorder %v729, 0.0
    %v897 = vand.u32 %v729, 2147483648
    %v898 = vsel %vm896, %v897, %v895
    %v899 = vrsqrt.pop %v731
    %v900 = vmul.f32 %v731, %v899
    %vm901 = vcmp.eq.f32.partialorder %v731, inf
    %v902 = vsel %vm901, %v731, %v900
    %vm903 = vcmp.eq.f32.partialorder %v731, 0.0
    %v904 = vand.u32 %v731, 2147483648
    %v905 = vsel %vm903, %v904, %v902
    %v906 = vrsqrt.pop %v733
    %v907 = vmul.f32 %v733, %v906
    %vm908 = vcmp.eq.f32.partialorder %v733, inf
    %v909 = vsel %vm908, %v733, %v907
    %vm910 = vcmp.eq.f32.partialorder %v733, 0.0
    %v911 = vand.u32 %v733, 2147483648
    %v912 = vsel %vm910, %v911, %v909
    %v913 = vrsqrt.pop %v735
    %v914 = vmul.f32 %v735, %v913
    %vm915 = vcmp.eq.f32.partialorder %v735, inf
    %v916 = vsel %vm915, %v735, %v914
    %vm917 = vcmp.eq.f32.partialorder %v735, 0.0
    %v918 = vand.u32 %v735, 2147483648
    %v919 = vsel %vm917, %v918, %v916
    %v920 = vrsqrt.pop %v737
    %v921 = vmul.f32 %v737, %v920
    %vm922 = vcmp.eq.f32.partialorder %v737, inf
    %v923 = vsel %vm922, %v737, %v921
    %vm924 = vcmp.eq.f32.partialorder %v737, 0.0
    %v925 = vand.u32 %v737, 2147483648
    %v926 = vsel %vm924, %v925, %v923
    %v927 = vrsqrt.pop %v739
    %v928 = vmul.f32 %v739, %v927
    %vm929 = vcmp.eq.f32.partialorder %v739, inf
    %v930 = vsel %vm929, %v739, %v928
    %vm931 = vcmp.eq.f32.partialorder %v739, 0.0
    %v932 = vand.u32 %v739, 2147483648
    %v933 = vsel %vm931, %v932, %v930
    %v934 = vrsqrt.pop %v741
    %v935 = vmul.f32 %v741, %v934
    %vm936 = vcmp.eq.f32.partialorder %v741, inf
    %v937 = vsel %vm936, %v741, %v935
    %vm938 = vcmp.eq.f32.partialorder %v741, 0.0
    %v939 = vand.u32 %v741, 2147483648
    %v940 = vsel %vm938, %v939, %v937
    %v941 = vrsqrt.pop %v743
    %v942 = vmul.f32 %v743, %v941
    %vm943 = vcmp.eq.f32.partialorder %v743, inf
    %v944 = vsel %vm943, %v743, %v942
    %vm945 = vcmp.eq.f32.partialorder %v743, 0.0
    %v946 = vand.u32 %v743, 2147483648
    %v947 = vsel %vm945, %v946, %v944
    %v948 = vrsqrt.pop %v745
    %v949 = vmul.f32 %v745, %v948
    %vm950 = vcmp.eq.f32.partialorder %v745, inf
    %v951 = vsel %vm950, %v745, %v949
    %vm952 = vcmp.eq.f32.partialorder %v745, 0.0
    %v953 = vand.u32 %v745, 2147483648
    %v954 = vsel %vm952, %v953, %v951
    %v955 = vrsqrt.pop %v747
    %v956 = vmul.f32 %v747, %v955
    %vm957 = vcmp.eq.f32.partialorder %v747, inf
    %v958 = vsel %vm957, %v747, %v956
    %vm959 = vcmp.eq.f32.partialorder %v747, 0.0
    %v960 = vand.u32 %v747, 2147483648
    %v961 = vsel %vm959, %v960, %v958
    %v962 = vrsqrt.pop %v749
    %v963 = vmul.f32 %v749, %v962
    %vm964 = vcmp.eq.f32.partialorder %v749, inf
    %v965 = vsel %vm964, %v749, %v963
    %vm966 = vcmp.eq.f32.partialorder %v749, 0.0
    %v967 = vand.u32 %v749, 2147483648
    %v968 = vsel %vm966, %v967, %v965
    %v969 = vrsqrt.pop %v751
    %v970 = vmul.f32 %v751, %v969
    %vm971 = vcmp.eq.f32.partialorder %v751, inf
    %v972 = vsel %vm971, %v751, %v970
    %vm973 = vcmp.eq.f32.partialorder %v751, 0.0
    %v974 = vand.u32 %v751, 2147483648
    %v975 = vsel %vm973, %v974, %v972
    %v976 = vrsqrt.pop %v769
    %v977 = vmul.f32 %v769, %v976
    %vm978 = vcmp.eq.f32.partialorder %v769, inf
    %v979 = vsel %vm978, %v769, %v977
    %vm980 = vcmp.eq.f32.partialorder %v769, 0.0
    %v981 = vand.u32 %v769, 2147483648
    %v982 = vsel %vm980, %v981, %v979
    %v983 = vrsqrt.pop %v771
    %v984 = vmul.f32 %v771, %v983
    %vm985 = vcmp.eq.f32.partialorder %v771, inf
    %v986 = vsel %vm985, %v771, %v984
    %vm987 = vcmp.eq.f32.partialorder %v771, 0.0
    %v988 = vand.u32 %v771, 2147483648
    %v989 = vsel %vm987, %v988, %v986
    %v990 = vrsqrt.pop %v773
    %v991 = vmul.f32 %v773, %v990
    %vm992 = vcmp.eq.f32.partialorder %v773, inf
    %v993 = vsel %vm992, %v773, %v991
    %vm994 = vcmp.eq.f32.partialorder %v773, 0.0
    %v995 = vand.u32 %v773, 2147483648
    %v996 = vsel %vm994, %v995, %v993
    %v997 = vrsqrt.pop %v775
    %v998 = vmul.f32 %v775, %v997
    %vm999 = vcmp.eq.f32.partialorder %v775, inf
    %v1000 = vsel %vm999, %v775, %v998
    %vm1001 = vcmp.eq.f32.partialorder %v775, 0.0
    %v1002 = vand.u32 %v775, 2147483648
    %v1003 = vsel %vm1001, %v1002, %v1000
    %v1004 = vrsqrt.pop %v777
    %v1005 = vmul.f32 %v777, %v1004
    %vm1006 = vcmp.eq.f32.partialorder %v777, inf
    %v1007 = vsel %vm1006, %v777, %v1005
    %vm1008 = vcmp.eq.f32.partialorder %v777, 0.0
    %v1009 = vand.u32 %v777, 2147483648
    %v1010 = vsel %vm1008, %v1009, %v1007
    %v1011 = vrsqrt.pop %v779
    %v1012 = vmul.f32 %v779, %v1011
    %vm1013 = vcmp.eq.f32.partialorder %v779, inf
    %v1014 = vsel %vm1013, %v779, %v1012
    %vm1015 = vcmp.eq.f32.partialorder %v779, 0.0
    %v1016 = vand.u32 %v779, 2147483648
    %v1017 = vsel %vm1015, %v1016, %v1014
    %v1018 = vrsqrt.pop %v781
    %v1019 = vmul.f32 %v781, %v1018
    %vm1020 = vcmp.eq.f32.partialorder %v781, inf
    %v1021 = vsel %vm1020, %v781, %v1019
    %vm1022 = vcmp.eq.f32.partialorder %v781, 0.0
    %v1023 = vand.u32 %v781, 2147483648
    %v1024 = vsel %vm1022, %v1023, %v1021
    %v1025 = vrsqrt.pop %v783
    %v1026 = vmul.f32 %v783, %v1025
    %vm1027 = vcmp.eq.f32.partialorder %v783, inf
    %v1028 = vsel %vm1027, %v783, %v1026
    %vm1029 = vcmp.eq.f32.partialorder %v783, 0.0
    %v1030 = vand.u32 %v783, 2147483648
    %v1031 = vsel %vm1029, %v1030, %v1028
    %v1032 = vrsqrt.pop %v785
    %v1033 = vmul.f32 %v785, %v1032
    %vm1034 = vcmp.eq.f32.partialorder %v785, inf
    %v1035 = vsel %vm1034, %v785, %v1033
    %vm1036 = vcmp.eq.f32.partialorder %v785, 0.0
    %v1037 = vand.u32 %v785, 2147483648
    %v1038 = vsel %vm1036, %v1037, %v1035
    %v1039 = vrsqrt.pop %v787
    %v1040 = vmul.f32 %v787, %v1039
    %vm1041 = vcmp.eq.f32.partialorder %v787, inf
    %v1042 = vsel %vm1041, %v787, %v1040
    %vm1043 = vcmp.eq.f32.partialorder %v787, 0.0
    %v1044 = vand.u32 %v787, 2147483648
    %v1045 = vsel %vm1043, %v1044, %v1042
    %v1046 = vrsqrt.pop %v789
    %v1047 = vmul.f32 %v789, %v1046
    %vm1048 = vcmp.eq.f32.partialorder %v789, inf
    %v1049 = vsel %vm1048, %v789, %v1047
    %vm1050 = vcmp.eq.f32.partialorder %v789, 0.0
    %v1051 = vand.u32 %v789, 2147483648
    %v1052 = vsel %vm1050, %v1051, %v1049
    %v1053 = vrsqrt.pop %v791
    %v1054 = vmul.f32 %v791, %v1053
    %vm1055 = vcmp.eq.f32.partialorder %v791, inf
    %v1056 = vsel %vm1055, %v791, %v1054
    %vm1057 = vcmp.eq.f32.partialorder %v791, 0.0
    %v1058 = vand.u32 %v791, 2147483648
    %v1059 = vsel %vm1057, %v1058, %v1056
    %v1060 = vrsqrt.pop %v793
    %v1061 = vmul.f32 %v793, %v1060
    %vm1062 = vcmp.eq.f32.partialorder %v793, inf
    %v1063 = vsel %vm1062, %v793, %v1061
    %vm1064 = vcmp.eq.f32.partialorder %v793, 0.0
    %v1065 = vand.u32 %v793, 2147483648
    %v1066 = vsel %vm1064, %v1065, %v1063
    %v1067 = vrsqrt.pop %v795
    %v1068 = vmul.f32 %v795, %v1067
    %vm1069 = vcmp.eq.f32.partialorder %v795, inf
    %v1070 = vsel %vm1069, %v795, %v1068
    %vm1071 = vcmp.eq.f32.partialorder %v795, 0.0
    %v1072 = vand.u32 %v795, 2147483648
    %v1073 = vsel %vm1071, %v1072, %v1070
    %v1074 = vrsqrt.pop %v797
    %v1075 = vmul.f32 %v797, %v1074
    %vm1076 = vcmp.eq.f32.partialorder %v797, inf
    %v1077 = vsel %vm1076, %v797, %v1075
    %vm1078 = vcmp.eq.f32.partialorder %v797, 0.0
    %v1079 = vand.u32 %v797, 2147483648
    %v1080 = vsel %vm1078, %v1079, %v1077
    %v1081 = vrsqrt.pop %v799
    %v1082 = vmul.f32 %v799, %v1081
    %vm1083 = vcmp.eq.f32.partialorder %v799, inf
    %v1084 = vsel %vm1083, %v799, %v1082
    %vm1085 = vcmp.eq.f32.partialorder %v799, 0.0
    %v1086 = vand.u32 %v799, 2147483648
    %v1087 = vsel %vm1085, %v1086, %v1084
    %v1088 = vmul.f32 %v801, 2e-06
    %v1089 = vmul.f32 %v803, 2e-06
    %v1090 = vmul.f32 %v805, 2e-06
    %v1091 = vmul.f32 %v807, 2e-06
    %v1092 = vmul.f32 %v809, 2e-06
    %v1093 = vmul.f32 %v811, 2e-06
    %v1094 = vmul.f32 %v813, 2e-06
    %v1095 = vmul.f32 %v815, 2e-06
    %v1096 = vmul.f32 %v817, 2e-06
    %v1097 = vmul.f32 %v819, 2e-06
    %v1098 = vmul.f32 %v821, 2e-06
    %v1099 = vmul.f32 %v823, 2e-06
    %v1100 = vmul.f32 %v825, 2e-06
    %v1101 = vmul.f32 %v827, 2e-06
    %v1102 = vmul.f32 %v829, 2e-06
    %v1103 = vmul.f32 %v831, 2e-06
    %v1104 = vadd.f32 %v721, %v1088
    %v1105 = vadd.f32 %v723, %v1089
    %v1106 = vadd.f32 %v725, %v1090
    %v1107 = vadd.f32 %v727, %v1091
    %v1108 = vadd.f32 %v729, %v1092
    %v1109 = vadd.f32 %v731, %v1093
    %v1110 = vadd.f32 %v733, %v1094
    %v1111 = vadd.f32 %v735, %v1095
    %v1112 = vadd.f32 %v737, %v1096
    %v1113 = vadd.f32 %v739, %v1097
    %v1114 = vadd.f32 %v741, %v1098
    %v1115 = vadd.f32 %v743, %v1099
    %v1116 = vadd.f32 %v745, %v1100
    %v1117 = vadd.f32 %v747, %v1101
    %v1118 = vadd.f32 %v749, %v1102
    %v1119 = vadd.f32 %v751, %v1103
    %v1120 = vadd.f32 %v1104, 1.6e-11
    %v1121 = vadd.f32 %v1105, 1.6e-11
    %v1122 = vadd.f32 %v1106, 1.6e-11
    %v1123 = vadd.f32 %v1107, 1.6e-11
    %v1124 = vadd.f32 %v1108, 1.6e-11
    %v1125 = vadd.f32 %v1109, 1.6e-11
    %v1126 = vadd.f32 %v1110, 1.6e-11
    %v1127 = vadd.f32 %v1111, 1.6e-11
    %v1128 = vadd.f32 %v1112, 1.6e-11
    %v1129 = vadd.f32 %v1113, 1.6e-11
    %v1130 = vadd.f32 %v1114, 1.6e-11
    %v1131 = vadd.f32 %v1115, 1.6e-11
    %v1132 = vadd.f32 %v1116, 1.6e-11
    %v1133 = vadd.f32 %v1117, 1.6e-11
    %v1134 = vadd.f32 %v1118, 1.6e-11
    %v1135 = vadd.f32 %v1119, 1.6e-11
    %v1136 = vrsqrt.pop %v1120
    %v1137 = vmul.f32 %v1120, %v1136
    %vm1138 = vcmp.eq.f32.partialorder %v1120, inf
    %v1139 = vsel %vm1138, %v1120, %v1137
    %vm1140 = vcmp.eq.f32.partialorder %v1120, 0.0
    %v1141 = vand.u32 %v1120, 2147483648
    %v1142 = vsel %vm1140, %v1141, %v1139
    %v1143 = vrsqrt.pop %v1121
    %v1144 = vmul.f32 %v1121, %v1143
    %vm1145 = vcmp.eq.f32.partialorder %v1121, inf
    %v1146 = vsel %vm1145, %v1121, %v1144
    %vm1147 = vcmp.eq.f32.partialorder %v1121, 0.0
    %v1148 = vand.u32 %v1121, 2147483648
    %v1149 = vsel %vm1147, %v1148, %v1146
    %v1150 = vrsqrt.pop %v1122
    %v1151 = vmul.f32 %v1122, %v1150
    %vm1152 = vcmp.eq.f32.partialorder %v1122, inf
    %v1153 = vsel %vm1152, %v1122, %v1151
    %vm1154 = vcmp.eq.f32.partialorder %v1122, 0.0
    %v1155 = vand.u32 %v1122, 2147483648
    %v1156 = vsel %vm1154, %v1155, %v1153
    %v1157 = vrsqrt.pop %v1123
    %v1158 = vmul.f32 %v1123, %v1157
    %vm1159 = vcmp.eq.f32.partialorder %v1123, inf
    %v1160 = vsel %vm1159, %v1123, %v1158
    %vm1161 = vcmp.eq.f32.partialorder %v1123, 0.0
    %v1162 = vand.u32 %v1123, 2147483648
    %v1163 = vsel %vm1161, %v1162, %v1160
    %v1164 = vrsqrt.pop %v1124
    %v1165 = vmul.f32 %v1124, %v1164
    %vm1166 = vcmp.eq.f32.partialorder %v1124, inf
    %v1167 = vsel %vm1166, %v1124, %v1165
    %vm1168 = vcmp.eq.f32.partialorder %v1124, 0.0
    %v1169 = vand.u32 %v1124, 2147483648
    %v1170 = vsel %vm1168, %v1169, %v1167
    %v1171 = vrsqrt.pop %v1125
    %v1172 = vmul.f32 %v1125, %v1171
    %vm1173 = vcmp.eq.f32.partialorder %v1125, inf
    %v1174 = vsel %vm1173, %v1125, %v1172
    %vm1175 = vcmp.eq.f32.partialorder %v1125, 0.0
    %v1176 = vand.u32 %v1125, 2147483648
    %v1177 = vsel %vm1175, %v1176, %v1174
    %v1178 = vrsqrt.pop %v1126
    %v1179 = vmul.f32 %v1126, %v1178
    %vm1180 = vcmp.eq.f32.partialorder %v1126, inf
    %v1181 = vsel %vm1180, %v1126, %v1179
    %vm1182 = vcmp.eq.f32.partialorder %v1126, 0.0
    %v1183 = vand.u32 %v1126, 2147483648
    %v1184 = vsel %vm1182, %v1183, %v1181
    %v1185 = vrsqrt.pop %v1127
    %v1186 = vmul.f32 %v1127, %v1185
    %vm1187 = vcmp.eq.f32.partialorder %v1127, inf
    %v1188 = vsel %vm1187, %v1127, %v1186
    %vm1189 = vcmp.eq.f32.partialorder %v1127, 0.0
    %v1190 = vand.u32 %v1127, 2147483648
    %v1191 = vsel %vm1189, %v1190, %v1188
    %v1192 = vrsqrt.pop %v1128
    %v1193 = vmul.f32 %v1128, %v1192
    %vm1194 = vcmp.eq.f32.partialorder %v1128, inf
    %v1195 = vsel %vm1194, %v1128, %v1193
    %vm1196 = vcmp.eq.f32.partialorder %v1128, 0.0
    %v1197 = vand.u32 %v1128, 2147483648
    %v1198 = vsel %vm1196, %v1197, %v1195
    %v1199 = vrsqrt.pop %v1129
    %v1200 = vmul.f32 %v1129, %v1199
    %vm1201 = vcmp.eq.f32.partialorder %v1129, inf
    %v1202 = vsel %vm1201, %v1129, %v1200
    %vm1203 = vcmp.eq.f32.partialorder %v1129, 0.0
    %v1204 = vand.u32 %v1129, 2147483648
    %v1205 = vsel %vm1203, %v1204, %v1202
    %v1206 = vrsqrt.pop %v1130
    %v1207 = vmul.f32 %v1130, %v1206
    %vm1208 = vcmp.eq.f32.partialorder %v1130, inf
    %v1209 = vsel %vm1208, %v1130, %v1207
    %vm1210 = vcmp.eq.f32.partialorder %v1130, 0.0
    %v1211 = vand.u32 %v1130, 2147483648
    %v1212 = vsel %vm1210, %v1211, %v1209
    %v1213 = vrsqrt.pop %v1131
    %v1214 = vmul.f32 %v1131, %v1213
    %vm1215 = vcmp.eq.f32.partialorder %v1131, inf
    %v1216 = vsel %vm1215, %v1131, %v1214
    %vm1217 = vcmp.eq.f32.partialorder %v1131, 0.0
    %v1218 = vand.u32 %v1131, 2147483648
    %v1219 = vsel %vm1217, %v1218, %v1216
    %v1220 = vrsqrt.pop %v1132
    %v1221 = vmul.f32 %v1132, %v1220
    %vm1222 = vcmp.eq.f32.partialorder %v1132, inf
    %v1223 = vsel %vm1222, %v1132, %v1221
    %vm1224 = vcmp.eq.f32.partialorder %v1132, 0.0
    %v1225 = vand.u32 %v1132, 2147483648
    %v1226 = vsel %vm1224, %v1225, %v1223
    %v1227 = vrsqrt.pop %v1133
    %v1228 = vmul.f32 %v1133, %v1227
    %vm1229 = vcmp.eq.f32.partialorder %v1133, inf
    %v1230 = vsel %vm1229, %v1133, %v1228
    %vm1231 = vcmp.eq.f32.partialorder %v1133, 0.0
    %v1232 = vand.u32 %v1133, 2147483648
    %v1233 = vsel %vm1231, %v1232, %v1230
    %v1234 = vrsqrt.pop %v1134
    %v1235 = vmul.f32 %v1134, %v1234
    %vm1236 = vcmp.eq.f32.partialorder %v1134, inf
    %v1237 = vsel %vm1236, %v1134, %v1235
    %vm1238 = vcmp.eq.f32.partialorder %v1134, 0.0
    %v1239 = vand.u32 %v1134, 2147483648
    %v1240 = vsel %vm1238, %v1239, %v1237
    %v1241 = vrsqrt.pop %v1135
    %v1242 = vmul.f32 %v1135, %v1241
    %vm1243 = vcmp.eq.f32.partialorder %v1135, inf
    %v1244 = vsel %vm1243, %v1135, %v1242
    %vm1245 = vcmp.eq.f32.partialorder %v1135, 0.0
    %v1246 = vand.u32 %v1135, 2147483648
    %v1247 = vsel %vm1245, %v1246, %v1244
    %v1248 = vmul.f32 %v833, 2e-06
    %v1249 = vmul.f32 %v835, 2e-06
    %v1250 = vmul.f32 %v837, 2e-06
    %v1251 = vmul.f32 %v839, 2e-06
    %v1252 = vmul.f32 %v841, 2e-06
    %v1253 = vmul.f32 %v843, 2e-06
    %v1254 = vmul.f32 %v845, 2e-06
    %v1255 = vmul.f32 %v847, 2e-06
    %v1256 = vmul.f32 %v849, 2e-06
    %v1257 = vmul.f32 %v851, 2e-06
    %v1258 = vmul.f32 %v853, 2e-06
    %v1259 = vmul.f32 %v855, 2e-06
    %v1260 = vmul.f32 %v857, 2e-06
    %v1261 = vmul.f32 %v859, 2e-06
    %v1262 = vmul.f32 %v861, 2e-06
    %v1263 = vmul.f32 %v863, 2e-06
    %v1264 = vadd.f32 %v769, %v1248
    %v1265 = vadd.f32 %v771, %v1249
    %v1266 = vadd.f32 %v773, %v1250
    %v1267 = vadd.f32 %v775, %v1251
    %v1268 = vadd.f32 %v777, %v1252
    %v1269 = vadd.f32 %v779, %v1253
    %v1270 = vadd.f32 %v781, %v1254
    %v1271 = vadd.f32 %v783, %v1255
    %v1272 = vadd.f32 %v785, %v1256
    %v1273 = vadd.f32 %v787, %v1257
    %v1274 = vadd.f32 %v789, %v1258
    %v1275 = vadd.f32 %v791, %v1259
    %v1276 = vadd.f32 %v793, %v1260
    %v1277 = vadd.f32 %v795, %v1261
    %v1278 = vadd.f32 %v797, %v1262
    %v1279 = vadd.f32 %v799, %v1263
    %v1280 = vadd.f32 %v1264, 1.6e-11
    %v1281 = vadd.f32 %v1265, 1.6e-11
    %v1282 = vadd.f32 %v1266, 1.6e-11
    %v1283 = vadd.f32 %v1267, 1.6e-11
    %v1284 = vadd.f32 %v1268, 1.6e-11
    %v1285 = vadd.f32 %v1269, 1.6e-11
    %v1286 = vadd.f32 %v1270, 1.6e-11
    %v1287 = vadd.f32 %v1271, 1.6e-11
    %v1288 = vadd.f32 %v1272, 1.6e-11
    %v1289 = vadd.f32 %v1273, 1.6e-11
    %v1290 = vadd.f32 %v1274, 1.6e-11
    %v1291 = vadd.f32 %v1275, 1.6e-11
    %v1292 = vadd.f32 %v1276, 1.6e-11
    %v1293 = vadd.f32 %v1277, 1.6e-11
    %v1294 = vadd.f32 %v1278, 1.6e-11
    %v1295 = vadd.f32 %v1279, 1.6e-11
    %v1296 = vrsqrt.pop %v1280
    %v1297 = vmul.f32 %v1280, %v1296
    %vm1298 = vcmp.eq.f32.partialorder %v1280, inf
    %v1299 = vsel %vm1298, %v1280, %v1297
    %vm1300 = vcmp.eq.f32.partialorder %v1280, 0.0
    %v1301 = vand.u32 %v1280, 2147483648
    %v1302 = vsel %vm1300, %v1301, %v1299
    %v1303 = vrsqrt.pop %v1281
    %v1304 = vmul.f32 %v1281, %v1303
    %vm1305 = vcmp.eq.f32.partialorder %v1281, inf
    %v1306 = vsel %vm1305, %v1281, %v1304
    %vm1307 = vcmp.eq.f32.partialorder %v1281, 0.0
    %v1308 = vand.u32 %v1281, 2147483648
    %v1309 = vsel %vm1307, %v1308, %v1306
    %v1310 = vrsqrt.pop %v1282
    %v1311 = vmul.f32 %v1282, %v1310
    %vm1312 = vcmp.eq.f32.partialorder %v1282, inf
    %v1313 = vsel %vm1312, %v1282, %v1311
    %vm1314 = vcmp.eq.f32.partialorder %v1282, 0.0
    %v1315 = vand.u32 %v1282, 2147483648
    %v1316 = vsel %vm1314, %v1315, %v1313
    %v1317 = vrsqrt.pop %v1283
    %v1318 = vmul.f32 %v1283, %v1317
    %vm1319 = vcmp.eq.f32.partialorder %v1283, inf
    %v1320 = vsel %vm1319, %v1283, %v1318
    %vm1321 = vcmp.eq.f32.partialorder %v1283, 0.0
    %v1322 = vand.u32 %v1283, 2147483648
    %v1323 = vsel %vm1321, %v1322, %v1320
    %v1324 = vrsqrt.pop %v1284
    %v1325 = vmul.f32 %v1284, %v1324
    %vm1326 = vcmp.eq.f32.partialorder %v1284, inf
    %v1327 = vsel %vm1326, %v1284, %v1325
    %vm1328 = vcmp.eq.f32.partialorder %v1284, 0.0
    %v1329 = vand.u32 %v1284, 2147483648
    %v1330 = vsel %vm1328, %v1329, %v1327
    %v1331 = vrsqrt.pop %v1285
    %v1332 = vmul.f32 %v1285, %v1331
    %vm1333 = vcmp.eq.f32.partialorder %v1285, inf
    %v1334 = vsel %vm1333, %v1285, %v1332
    %vm1335 = vcmp.eq.f32.partialorder %v1285, 0.0
    %v1336 = vand.u32 %v1285, 2147483648
    %v1337 = vsel %vm1335, %v1336, %v1334
    %v1338 = vrsqrt.pop %v1286
    %v1339 = vmul.f32 %v1286, %v1338
    %vm1340 = vcmp.eq.f32.partialorder %v1286, inf
    %v1341 = vsel %vm1340, %v1286, %v1339
    %vm1342 = vcmp.eq.f32.partialorder %v1286, 0.0
    %v1343 = vand.u32 %v1286, 2147483648
    %v1344 = vsel %vm1342, %v1343, %v1341
    %v1345 = vrsqrt.pop %v1287
    %v1346 = vmul.f32 %v1287, %v1345
    %vm1347 = vcmp.eq.f32.partialorder %v1287, inf
    %v1348 = vsel %vm1347, %v1287, %v1346
    %vm1349 = vcmp.eq.f32.partialorder %v1287, 0.0
    %v1350 = vand.u32 %v1287, 2147483648
    %v1351 = vsel %vm1349, %v1350, %v1348
    %v1352 = vrsqrt.pop %v1288
    %v1353 = vmul.f32 %v1288, %v1352
    %vm1354 = vcmp.eq.f32.partialorder %v1288, inf
    %v1355 = vsel %vm1354, %v1288, %v1353
    %vm1356 = vcmp.eq.f32.partialorder %v1288, 0.0
    %v1357 = vand.u32 %v1288, 2147483648
    %v1358 = vsel %vm1356, %v1357, %v1355
    %v1359 = vrsqrt.pop %v1289
    %v1360 = vmul.f32 %v1289, %v1359
    %vm1361 = vcmp.eq.f32.partialorder %v1289, inf
    %v1362 = vsel %vm1361, %v1289, %v1360
    %vm1363 = vcmp.eq.f32.partialorder %v1289, 0.0
    %v1364 = vand.u32 %v1289, 2147483648
    %v1365 = vsel %vm1363, %v1364, %v1362
    %v1366 = vrsqrt.pop %v1290
    %v1367 = vmul.f32 %v1290, %v1366
    %vm1368 = vcmp.eq.f32.partialorder %v1290, inf
    %v1369 = vsel %vm1368, %v1290, %v1367
    %vm1370 = vcmp.eq.f32.partialorder %v1290, 0.0
    %v1371 = vand.u32 %v1290, 2147483648
    %v1372 = vsel %vm1370, %v1371, %v1369
    %v1373 = vrsqrt.pop %v1291
    %v1374 = vmul.f32 %v1291, %v1373
    %vm1375 = vcmp.eq.f32.partialorder %v1291, inf
    %v1376 = vsel %vm1375, %v1291, %v1374
    %vm1377 = vcmp.eq.f32.partialorder %v1291, 0.0
    %v1378 = vand.u32 %v1291, 2147483648
    %v1379 = vsel %vm1377, %v1378, %v1376
    %v1380 = vrsqrt.pop %v1292
    %v1381 = vmul.f32 %v1292, %v1380
    %vm1382 = vcmp.eq.f32.partialorder %v1292, inf
    %v1383 = vsel %vm1382, %v1292, %v1381
    %vm1384 = vcmp.eq.f32.partialorder %v1292, 0.0
    %v1385 = vand.u32 %v1292, 2147483648
    %v1386 = vsel %vm1384, %v1385, %v1383
    %v1387 = vrsqrt.pop %v1293
    %v1388 = vmul.f32 %v1293, %v1387
    %vm1389 = vcmp.eq.f32.partialorder %v1293, inf
    %v1390 = vsel %vm1389, %v1293, %v1388
    %vm1391 = vcmp.eq.f32.partialorder %v1293, 0.0
    %v1392 = vand.u32 %v1293, 2147483648
    %v1393 = vsel %vm1391, %v1392, %v1390
    %v1394 = vrsqrt.pop %v1294
    %v1395 = vmul.f32 %v1294, %v1394
    %vm1396 = vcmp.eq.f32.partialorder %v1294, inf
    %v1397 = vsel %vm1396, %v1294, %v1395
    %vm1398 = vcmp.eq.f32.partialorder %v1294, 0.0
    %v1399 = vand.u32 %v1294, 2147483648
    %v1400 = vsel %vm1398, %v1399, %v1397
    %v1401 = vrsqrt.pop %v1295
    %v1402 = vmul.f32 %v1295, %v1401
    %vm1403 = vcmp.eq.f32.partialorder %v1295, inf
    %v1404 = vsel %vm1403, %v1295, %v1402
    %vm1405 = vcmp.eq.f32.partialorder %v1295, 0.0
    %v1406 = vand.u32 %v1295, 2147483648
    %v1407 = vsel %vm1405, %v1406, %v1404
    %v1408 = vsub.f32 %v1142, %v1302
    %v1409 = vsub.f32 %v1149, %v1309
    %v1410 = vsub.f32 %v1156, %v1316
    %v1411 = vsub.f32 %v1163, %v1323
    %v1412 = vsub.f32 %v1170, %v1330
    %v1413 = vsub.f32 %v1177, %v1337
    %v1414 = vsub.f32 %v1184, %v1344
    %v1415 = vsub.f32 %v1191, %v1351
    %v1416 = vsub.f32 %v1198, %v1358
    %v1417 = vsub.f32 %v1205, %v1365
    %v1418 = vsub.f32 %v1212, %v1372
    %v1419 = vsub.f32 %v1219, %v1379
    %v1420 = vsub.f32 %v1226, %v1386
    %v1421 = vsub.f32 %v1233, %v1393
    %v1422 = vsub.f32 %v1240, %v1400
    %v1423 = vsub.f32 %v1247, %v1407
    %v1424 = vadd.f32 %v1408, 0.3
    %v1425 = vadd.f32 %v1409, 0.3
    %v1426 = vadd.f32 %v1410, 0.3
    %v1427 = vadd.f32 %v1411, 0.3
    %v1428 = vadd.f32 %v1412, 0.3
    %v1429 = vadd.f32 %v1413, 0.3
    %v1430 = vadd.f32 %v1414, 0.3
    %v1431 = vadd.f32 %v1415, 0.3
    %v1432 = vadd.f32 %v1416, 0.3
    %v1433 = vadd.f32 %v1417, 0.3
    %v1434 = vadd.f32 %v1418, 0.3
    %v1435 = vadd.f32 %v1419, 0.3
    %v1436 = vadd.f32 %v1420, 0.3
    %v1437 = vadd.f32 %v1421, 0.3
    %v1438 = vadd.f32 %v1422, 0.3
    %v1439 = vadd.f32 %v1423, 0.3
    %v1440 = vmax.f32 %v1424, 0.0
    %v1441 = vmax.f32 %v1425, 0.0
    %v1442 = vmax.f32 %v1426, 0.0
    %v1443 = vmax.f32 %v1427, 0.0
    %v1444 = vmax.f32 %v1428, 0.0
    %v1445 = vmax.f32 %v1429, 0.0
    %v1446 = vmax.f32 %v1430, 0.0
    %v1447 = vmax.f32 %v1431, 0.0
    %v1448 = vmax.f32 %v1432, 0.0
    %v1449 = vmax.f32 %v1433, 0.0
    %v1450 = vmax.f32 %v1434, 0.0
    %v1451 = vmax.f32 %v1435, 0.0
    %v1452 = vmax.f32 %v1436, 0.0
    %v1453 = vmax.f32 %v1437, 0.0
    %v1454 = vmax.f32 %v1438, 0.0
    %v1455 = vmax.f32 %v1439, 0.0
    %vm1456 = vcmask 7168
    %v1457 = vsel %vm1456, %v870, %v982
    %v1458 = vsel %vm1456, %v877, %v989
    %v1459 = vsel %vm1456, %v884, %v996
    %v1460 = vsel %vm1456, %v891, %v1003
    %v1461 = vsel %vm1456, %v898, %v1010
    %v1462 = vsel %vm1456, %v905, %v1017
    %v1463 = vsel %vm1456, %v912, %v1024
    %v1464 = vsel %vm1456, %v919, %v1031
    %v1465 = vsel %vm1456, %v926, %v1038
    %v1466 = vsel %vm1456, %v933, %v1045
    %v1467 = vsel %vm1456, %v940, %v1052
    %v1468 = vsel %vm1456, %v947, %v1059
    %v1469 = vsel %vm1456, %v954, %v1066
    %v1470 = vsel %vm1456, %v961, %v1073
    %v1471 = vsel %vm1456, %v968, %v1080
    %v1472 = vsel %vm1456, %v975, %v1087
    %vm1473 = vcmask 15360
    %v1474 = vsel %vm1473, %v1457, %v1440
    %v1475 = vsel %vm1473, %v1458, %v1441
    %v1476 = vsel %vm1473, %v1459, %v1442
    %v1477 = vsel %vm1473, %v1460, %v1443
    %v1478 = vsel %vm1473, %v1461, %v1444
    %v1479 = vsel %vm1473, %v1462, %v1445
    %v1480 = vsel %vm1473, %v1463, %v1446
    %v1481 = vsel %vm1473, %v1464, %v1447
    %v1482 = vsel %vm1473, %v1465, %v1448
    %v1483 = vsel %vm1473, %v1466, %v1449
    %v1484 = vsel %vm1473, %v1467, %v1450
    %v1485 = vsel %vm1473, %v1468, %v1451
    %v1486 = vsel %vm1473, %v1469, %v1452
    %v1487 = vsel %vm1473, %v1470, %v1453
    %v1488 = vsel %vm1473, %v1471, %v1454
    %v1489 = vsel %vm1473, %v1472, %v1455
    %vm1490 = vcmask 23552
    %v1491 = vsel %vm1490, %v1474, 0.0
    %v1492 = vsel %vm1490, %v1475, 0.0
    %v1493 = vsel %vm1490, %v1476, 0.0
    %v1494 = vsel %vm1490, %v1477, 0.0
    %v1495 = vsel %vm1490, %v1478, 0.0
    %v1496 = vsel %vm1490, %v1479, 0.0
    %v1497 = vsel %vm1490, %v1480, 0.0
    %v1498 = vsel %vm1490, %v1481, 0.0
    %v1499 = vsel %vm1490, %v1482, 0.0
    %v1500 = vsel %vm1490, %v1483, 0.0
    %v1501 = vsel %vm1490, %v1484, 0.0
    %v1502 = vsel %vm1490, %v1485, 0.0
    %v1503 = vsel %vm1490, %v1486, 0.0
    %v1504 = vsel %vm1490, %v1487, 0.0
    %v1505 = vsel %vm1490, %v1488, 0.0
    %v1506 = vsel %vm1490, %v1489, 0.0
    %1507 = vxpose.xlu0.b32.start [1/16] %v1491, 128
    %1508 = vxpose.xlu0.b32.cont [2/16] %v1492, 128
    %1509 = vxpose.xlu0.b32.cont [3/16] %v1493, 128
    %1510 = vxpose.xlu0.b32.cont [4/16] %v1494, 128
    %1511 = vxpose.xlu0.b32.cont [5/16] %v1495, 128
    %1512 = vxpose.xlu0.b32.cont [6/16] %v1496, 128
    %1513 = vxpose.xlu0.b32.cont [7/16] %v1497, 128
    %1514 = vxpose.xlu0.b32.cont [8/16] %v1498, 128
    %1515 = vxpose.xlu0.b32.cont [9/16] %v1499, 128
    %1516 = vxpose.xlu0.b32.cont [10/16] %v1500, 128
    %1517 = vxpose.xlu0.b32.cont [11/16] %v1501, 128
    %1518 = vxpose.xlu0.b32.cont [12/16] %v1502, 128
    %1519 = vxpose.xlu0.b32.cont [13/16] %v1503, 128
    %1520 = vxpose.xlu0.b32.cont [14/16] %v1504, 128
    %1521 = vxpose.xlu0.b32.cont [15/16] %v1505, 128
    %1522 = vxpose.xlu0.b32.end [16/16] %v1506, 128
    %v1523 = vpop.trf.xlu0
    %v1524 = vpop.trf.xlu0
    %v1525 = vpop.trf.xlu0
    %v1526 = vpop.trf.xlu0
    %v1527 = vpop.trf.xlu0
    %v1528 = vpop.trf.xlu0
    %v1529 = vpop.trf.xlu0
    %v1530 = vpop.trf.xlu0
    %v1531 = vpop.trf.xlu0
    %v1532 = vpop.trf.xlu0
    %v1533 = vpop.trf.xlu0
    %v1534 = vpop.trf.xlu0
    %v1535 = vpop.trf.xlu0
    %v1536 = vpop.trf.xlu0
    %v1537 = vpop.trf.xlu0
    %v1538 = vpop.trf.xlu0
    %1539 = vst [vmem:[#allocation8] sm:$0xff] %v1523
    // Predicated region
    $region38: #{tpu_custom_call.1} parent=1 // pred_check
      _
    $region39: #{tpu_custom_call.1} parent=1 // pred_check_branch
      %1541 = sbr.rel (0) target = $region41
    $region40: #{tpu_custom_call.1} parent=1 // pred_region
      %s1543 = ssub.s32 128, 128
      %1544 = vsyncadd [#allocation4], %s1543
      %s1546 = sshll.u32 [#allocation8], 4
      %s1547 = int_to_ptr.vmem [resolvable:$true] %s1546
      %1549 = dma.vmem_to_hbm [thread:$0]  %s1547, 128, %s6, [#allocation4]
    $region41: #{tpu_custom_call.1} parent=1 // pred_fallthru
      _
    // Predicated region
    $region42: #{tpu_custom_call.1} parent=1 // pred_check
      _
    $region43: #{tpu_custom_call.1} parent=1 // pred_check_branch
      %1551 = sbr.rel (0) target = $region45
    $region44: #{tpu_custom_call.1} parent=1 // pred_region
      %1552 = dma.done [#allocation4], 128
    $region45: #{tpu_custom_call.1} parent=1 // pred_fallthru
      _
    %1553 = vsyncpa [#allocation3], 1
    %1554 = vsyncpa [#allocation6], 1
    %1555 = vsyncpa [#allocation4], 1

</llo_original>
